<compile_context>
chip_gen: v6e
topology: v6e:2x2x1
jax: 0.10.0
libtpu: 0.0.40
codegen_flags: <defaults>
</compile_context>

<pallas_src>
import functools

import jax
import jax.numpy as jnp
from jax.experimental import pallas as pl
from jax.experimental.pallas import tpu as pltpu

EPS = 1e-5
H1, H2 = 100, 50        # hidden widths of the torch module
H1P, H2P = 128, 128     # lane-padded widths (multiples of 128)


def _round_up(n, m):
    return ((n + m - 1) // m) * m


def _pad2(a, shape):
    return jnp.pad(a, ((0, shape[0] - a.shape[0]), (0, shape[1] - a.shape[1])))


# --------------------------------------------------------------------------
# Generation-aware VMEM sizing (v7x: 64 MiB physical, v5e/v6e: 128 MiB).
# --------------------------------------------------------------------------
def _vmem_limit_and_budget():
    phys = 64 << 20                      # conservative default = v7x per-core VMEM
    try:
        info = pltpu.get_tpu_info()
        cap = getattr(info, "vmem_capacity_bytes", None)
        if cap:
            phys = int(cap)
    except Exception:
        pass
    limit = int(min(phys * 3 // 4, 96 << 20))   # scoped limit we request
    budget = int(limit * 3 // 5)                # what our own tiles may occupy
    return limit, budget


def _choose_k_tile(rows, f_padded, budget):
    """K tile: multiple of 128 dividing the (128-padded) feature dim, sized so
    the double-buffered f32 x tile (2*rows*tk*4 B) stays within ~budget/3."""
    max_bytes = max(budget // 3, 1 << 20)
    max_tk = max(128, (max_bytes // (2 * rows * 4)) // 128 * 128)
    tk = int(min(f_padded, max_tk, 2048))
    tk = max(128, (tk // 128) * 128)
    while tk > 128 and f_padded % tk != 0:
        tk -= 128
    return tk if f_padded % tk == 0 else 128


def _choose_batch_tile(B, budget):
    """Batch tile for the gridded path: multiple of 16 (bf16 sublane packing),
    dividing the padded batch, with >=2 tiles so the grid pipelines and v7x
    shards the parallel axis across both TensorCores."""
    bp = _round_up(B, 16)
    per_row = 6 * 1024                   # ~double-buffered z1/z2/logits/acc bytes
    max_tb = max(16, min(bp, 1024, (budget // 4) // per_row))
    max_tb = (max_tb // 16) * 16
    for cand in range(max_tb, 15, -16):
        if bp % cand == 0 and bp // cand >= 2:
            return cand, bp
    return min(max_tb, bp), bp


def _fused_fits(B, f_padded, cp, budget):
    """Can the whole forward stay resident in one fused call?"""
    tk = _choose_k_tile(B, f_padded, budget)
    per_row = H1P * 4 + cp * 4 + 4 * H1P * 4        # z1 acc + logits + head temps
    resident = B * per_row + 2 * B * tk * 4 + 2 * tk * H1P * 2
    weights = H1P * H2P * 2 + H2P * cp * 2 + 2 * (2 * H1P + 2 * H2P + cp) * 4
    return (resident + weights) <= budget, tk


# --------------------------------------------------------------------------
# Fused kernel (small/medium problems): x@W1 K-tiled + whole head, one call.
# --------------------------------------------------------------------------
def _fused_kernel(x_ref, w1_ref, gb1_ref, w2_ref, gb2_ref, w3_ref, b3_ref,
                  out_ref, z1_acc):
    @pl.when(pl.program_id(0) == 0)
    def _():
        z1_acc[...] = jnp.zeros_like(z1_acc)

    z1_acc[...] += jnp.dot(x_ref[...].astype(jnp.bfloat16), w1_ref[...],
                           preferred_element_type=jnp.float32)

    @pl.when(pl.program_id(0) == pl.num_programs(0) - 1)
    def _():
        def bn_relu(z, gb):
            # two-pass batch stats (data is VMEM-resident, so this is cheap and
            # avoids E[z^2]-mu^2 cancellation)
            mu = jnp.mean(z, axis=0, keepdims=True)
            var = jnp.mean((z - mu) ** 2, axis=0, keepdims=True)
            h = (z - mu) * jax.lax.rsqrt(var + EPS) * gb[0:1, :] + gb[1:2, :]
            return jnp.maximum(h, 0.0)

        h1 = bn_relu(z1_acc[...], gb1_ref[...])                       # (B, H1P)
        z2 = jnp.dot(h1.astype(jnp.bfloat16), w2_ref[...],
                     preferred_element_type=jnp.float32)              # (B, H2P)
        h2 = bn_relu(z2, gb2_ref[...])
        logits = jnp.dot(h2.astype(jnp.bfloat16), w3_ref[...],
                         preferred_element_type=jnp.float32) + b3_ref[...]
        out_ref[...] = logits.astype(out_ref.dtype)


def _forward_fused(x, prepared, vmem_limit, tk):
    (w1p, gb1, w2p, gb2, w3p, b3p) = prepared
    B, f_padded = x.shape
    cp = b3p.shape[1]
    nk = f_padded // tk
    return pl.pallas_call(
        _fused_kernel,
        out_shape=jax.ShapeDtypeStruct((B, cp), jnp.float32),
        grid=(nk,),
        in_specs=[
            pl.BlockSpec((B, tk), lambda k: (0, k)),      # x: K-tiled stream
            pl.BlockSpec((tk, H1P), lambda k: (k, 0)),    # W1: K-tiled stream
            pl.BlockSpec((2, H1P), lambda k: (0, 0)),
            pl.BlockSpec((H1P, H2P), lambda k: (0, 0)),
            pl.BlockSpec((2, H2P), lambda k: (0, 0)),
            pl.BlockSpec((H2P, cp), lambda k: (0, 0)),
            pl.BlockSpec((1, cp), lambda k: (0, 0)),
        ],
        out_specs=pl.BlockSpec((B, cp), lambda k: (0, 0)),
        scratch_shapes=[pltpu.VMEM((B, H1P), jnp.float32)],
        compiler_params=pltpu.CompilerParams(
            dimension_semantics=("arbitrary",),           # K is a reduction axis
            vmem_limit_bytes=vmem_limit,
        ),
    )(x, w1p, gb1, w2p, gb2, w3p, b3p)


# --------------------------------------------------------------------------
# Gridded 3-stage path (large batches): every stage batch-"parallel".
# --------------------------------------------------------------------------
def _stage1_kernel(x_ref, w1_ref, z1_ref, stats_ref, acc_ref):
    k = pl.program_id(1)

    @pl.when(k == 0)
    def _():
        acc_ref[...] = jnp.zeros_like(acc_ref)

    acc_ref[...] += jnp.dot(x_ref[...].astype(jnp.bfloat16), w1_ref[...],
                            preferred_element_type=jnp.float32)

    @pl.when(k == pl.num_programs(1) - 1)
    def _():
        z1 = acc_ref[...]
        z1_ref[...] = z1.astype(z1_ref.dtype)             # bf16 HBM intermediate
        s = jnp.sum(z1, axis=0, keepdims=True)            # per-tile BN1 partials
        ss = jnp.sum(z1 * z1, axis=0, keepdims=True)      # (stats in f32, pre-cast)
        stats_ref[...] = jnp.concatenate([s, ss], axis=0)[None]


def _make_stage2_kernel(b_real, tb):
    def kernel(z1_ref, scsh1_ref, w2_ref, z2_ref, stats_ref):
        i = pl.program_id(0)
        h1 = jnp.maximum(z1_ref[...].astype(jnp.float32) * scsh1_ref[0:1, :]
                         + scsh1_ref[1:2, :], 0.0)
        # zero batch-padding rows so they cannot pollute BN2 statistics
        rows = i * tb + jax.lax.broadcasted_iota(jnp.int32, h1.shape, 0)
        h1 = jnp.where(rows < b_real, h1, 0.0)
        z2 = jnp.dot(h1.astype(jnp.bfloat16), w2_ref[...],
                     preferred_element_type=jnp.float32)
        z2_ref[...] = z2.astype(z2_ref.dtype)
        s = jnp.sum(z2, axis=0, keepdims=True)
        ss = jnp.sum(z2 * z2, axis=0, keepdims=True)
        stats_ref[...] = jnp.concatenate([s, ss], axis=0)[None]
    return kernel


def _stage3_kernel(z2_ref, scsh2_ref, w3_ref, b3_ref, out_ref):
    h2 = jnp.maximum(z2_ref[...].astype(jnp.float32) * scsh2_ref[0:1, :]
                     + scsh2_ref[1:2, :], 0.0)
    out_ref[...] = (jnp.dot(h2.astype(jnp.bfloat16), w3_ref[...],
                            preferred_element_type=jnp.float32)
                    + b3_ref[...]).astype(out_ref.dtype)


def _bn_scale_shift(partials, gb, b_real):
    """Reduce per-tile (sum, sumsq) partials -> fused BN scale/shift, (2, W)."""
    s = jnp.sum(partials, axis=0)
    mu = s[0] / b_real
    # TODO(synk): one-pass E[z^2]-mu^2 can cancel for large-mean activations;
    # switch to a shifted/Welford combine if used far beyond init scale.
    var = jnp.maximum(s[1] / b_real - mu * mu, 0.0)
    scale = gb[0] * jax.lax.rsqrt(var + EPS)
    shift = gb[1] - mu * scale
    return jnp.stack([scale, shift])


def _forward_split(x, b_real, prepared, vmem_limit, budget):
    (w1p, gb1, w2p, gb2, w3p, b3p) = prepared
    B, f_padded = x.shape
    cp = b3p.shape[1]
    tb, bp = _choose_batch_tile(B, budget)
    if bp != B:
        x = jnp.pad(x, ((0, bp - B), (0, 0)))   # zero rows; masked out of BN stats
    nb = bp // tb
    tk = _choose_k_tile(tb, f_padded, budget)
    nk = f_padded // tk

    cp2d = pltpu.CompilerParams(dimension_semantics=("parallel", "arbitrary"),
                                vmem_limit_bytes=vmem_limit)
    cp1d = pltpu.CompilerParams(dimension_semantics=("parallel",),
                                vmem_limit_bytes=vmem_limit)

    # ---- stage 1: z1 = x @ W1 (bf16 out) + per-tile BN1 partial stats ----
    z1, p1 = pl.pallas_call(
        _stage1_kernel,
        out_shape=(jax.ShapeDtypeStruct((bp, H1P), jnp.bfloat16),
                   jax.ShapeDtypeStruct((nb, 2, H1P), jnp.float32)),
        grid=(nb, nk),
        in_specs=[pl.BlockSpec((tb, tk), lambda i, k: (i, k)),
                  pl.BlockSpec((tk, H1P), lambda i, k: (k, 0))],
        out_specs=(pl.BlockSpec((tb, H1P), lambda i, k: (i, 0)),
                   pl.BlockSpec((1, 2, H1P), lambda i, k: (i, 0, 0))),
        scratch_shapes=[pltpu.VMEM((tb, H1P), jnp.float32)],
        compiler_params=cp2d,
    )(x, w1p)
    scsh1 = _bn_scale_shift(p1, gb1, b_real)

    # ---- stage 2: h1 = ReLU(BN1(z1)); z2 = h1 @ W2 + BN2 partial stats ----
    z2, p2 = pl.pallas_call(
        _make_stage2_kernel(b_real, tb),
        out_shape=(jax.ShapeDtypeStruct((bp, H2P), jnp.bfloat16),
                   jax.ShapeDtypeStruct((nb, 2, H2P), jnp.float32)),
        grid=(nb,),
        in_specs=[pl.BlockSpec((tb, H1P), lambda i: (i, 0)),
                  pl.BlockSpec((2, H1P), lambda i: (0, 0)),
                  pl.BlockSpec((H1P, H2P), lambda i: (0, 0))],
        out_specs=(pl.BlockSpec((tb, H2P), lambda i: (i, 0)),
                   pl.BlockSpec((1, 2, H2P), lambda i: (i, 0, 0))),
        compiler_params=cp1d,
    )(z1, scsh1, w2p)
    scsh2 = _bn_scale_shift(p2, gb2, b_real)

    # ---- stage 3: h2 = ReLU(BN2(z2)); logits = h2 @ W3 + b3 ----
    logits = pl.pallas_call(
        _stage3_kernel,
        out_shape=jax.ShapeDtypeStruct((bp, cp), jnp.float32),
        grid=(nb,),
        in_specs=[pl.BlockSpec((tb, H2P), lambda i: (i, 0)),
                  pl.BlockSpec((2, H2P), lambda i: (0, 0)),
                  pl.BlockSpec((H2P, cp), lambda i: (0, 0)),
                  pl.BlockSpec((1, cp), lambda i: (0, 0))],
        out_specs=pl.BlockSpec((tb, cp), lambda i: (i, 0)),
        compiler_params=cp1d,
    )(z2, scsh2, w3p, b3p)
    return logits


# --------------------------------------------------------------------------
# Host-side parameter prep and forward wrapper
# --------------------------------------------------------------------------
def prepare_params(params, num_classes):
    """One-time layout prep: transpose (out,in)->(in,out), pad lane dims to 128,
    cast matmul weights to bf16, stack gamma/beta, drop b1/b2 (bias feeding a
    batch-stat BatchNorm cancels exactly)."""
    (w1, b1, g1, be1, w2, b2, g2, be2, w3, b3) = params
    del b1, b2
    F = w1.shape[1]
    cp = _round_up(num_classes, 128)
    w1p = _pad2(w1.T.astype(jnp.float32),
                (_round_up(F, 128), H1P)).astype(jnp.bfloat16)
    gb1 = _pad2(jnp.stack([g1, be1]).astype(jnp.float32), (2, H1P))
    w2p = _pad2(w2.T.astype(jnp.float32), (H1P, H2P)).astype(jnp.bfloat16)
    gb2 = _pad2(jnp.stack([g2, be2]).astype(jnp.float32), (2, H2P))
    w3p = _pad2(w3.T.astype(jnp.float32), (H2P, cp)).astype(jnp.bfloat16)
    b3p = _pad2(b3[None, :].astype(jnp.float32), (1, cp))
    return (w1p, gb1, w2p, gb2, w3p, b3p)


@functools.partial(jax.jit, static_argnums=(2, 3))
def pytorch_mlp_forward(x_nchw, prepared, num_classes, path="auto"):
    """x_nchw: (B, C, H, W) float32 or bfloat16. Returns (B, num_classes) f32."""
    (w1p, gb1, w2p, gb2, w3p, b3p) = prepared
    B = x_nchw.shape[0]
    x = x_nchw.reshape(B, -1)                 # torch.flatten(x, start_dim=1)
    F = x.shape[1]
    f_padded = w1p.shape[0]
    if F != f_padded:
        # TODO(synk): avoid this HBM pad pass by masking the last K tile instead.
        x = jnp.pad(x, ((0, 0), (0, f_padded - F)))
    cp = b3p.shape[1]

    vmem_limit, budget = _vmem_limit_and_budget()
    fits, tk = _fused_fits(B, f_padded, cp, budget)
    use_fused = (path == "fused") or (path == "auto" and fits)
    if use_fused:
        logits = _forward_fused(x, prepared, vmem_limit, tk)
    else:
        logits = _forward_split(x, B, prepared, vmem_limit, budget)
    return logits[:B, :num_classes]


# --------------------------------------------------------------------------
# Init + pure-JAX reference (original PyTorch math, f32, biases included)
# --------------------------------------------------------------------------
def init_params(key, num_features, num_classes):
    def linear(key, fan_in, fan_out):
        kw, kb = jax.random.split(key)
        bound = 1.0 / jnp.sqrt(fan_in)
        w = jax.random.uniform(kw, (fan_out, fan_in), jnp.float32, -bound, bound)
        b = jax.random.uniform(kb, (fan_out,), jnp.float32, -bound, bound)
        return w, b

    k1, k2, k3 = jax.random.split(key, 3)
    w1, b1 = linear(k1, num_features, H1)
    w2, b2 = linear(k2, H1, H2)
    w3, b3 = linear(k3, H2, num_classes)
    g1, be1 = jnp.ones((H1,), jnp.float32), jnp.zeros((H1,), jnp.float32)
    g2, be2 = jnp.ones((H2,), jnp.float32), jnp.zeros((H2,), jnp.float32)
    return (w1, b1, g1, be1, w2, b2, g2, be2, w3, b3)


def reference_forward(x_nchw, params):
    (w1, b1, g1, be1, w2, b2, g2, be2, w3, b3) = params
    x = x_nchw.reshape(x_nchw.shape[0], -1)

    def bn(h, g, be):
        mu = jnp.mean(h, axis=0, keepdims=True)
        var = jnp.mean((h - mu) ** 2, axis=0, keepdims=True)
        return (h - mu) * jax.lax.rsqrt(var + EPS) * g + be

    h = jnp.maximum(bn(x @ w1.T + b1, g1, be1), 0.0)
    h = jnp.maximum(bn(h @ w2.T + b2, g2, be2), 0.0)
    return h @ w3.T + b3


if __name__ == "__main__":
    # Small shapes: F = 4*16*16 = 1024, batch 64.
    B, C, H, W = 64, 4, 16, 16
    num_features = C * H * W
    num_classes = 10

    key = jax.random.PRNGKey(0)
    kx, kp = jax.random.split(key)
    x = jax.random.normal(kx, (B, C, H, W), jnp.float32)
    params = init_params(kp, num_features, num_classes)
    prepared = prepare_params(params, num_classes)
    ref = reference_forward(x, params)

    # Fused single-call path (auto-selected at this scale).
    logits = jax.block_until_ready(
        pytorch_mlp_forward(x, prepared, num_classes, "auto"))
    assert logits.shape == (B, num_classes)
    err = float(jnp.max(jnp.abs(logits - ref)))
    assert jnp.allclose(logits, ref, atol=5e-2, rtol=5e-2), f"fused max err {err}"

    # Large-batch gridded 3-stage path, exercised here at small scale
    # (bf16 z1/z2 intermediates -> slightly relaxed tolerance).
    logits_s = jax.block_until_ready(
        pytorch_mlp_forward(x, prepared, num_classes, "split"))
    err_s = float(jnp.max(jnp.abs(logits_s - ref)))
    assert jnp.allclose(logits_s, ref, atol=1e-1, rtol=1e-1), f"split max err {err_s}"

    print("KERNEL_OK")
</pallas_src>

<mosaic_0001>
module attributes {stable_mosaic.version = 11 : i64} {
  func.func @_fused_kernel(%arg0: i32, %arg1: memref<64x1024xf32, #tpu.memory_space<vmem>>, %arg2: memref<1024x128xbf16, #tpu.memory_space<vmem>>, %arg3: memref<2x128xf32, #tpu.memory_space<vmem>>, %arg4: memref<128x128xbf16, #tpu.memory_space<vmem>>, %arg5: memref<2x128xf32, #tpu.memory_space<vmem>>, %arg6: memref<128x128xbf16, #tpu.memory_space<vmem>>, %arg7: memref<1x128xf32, #tpu.memory_space<vmem>>, %arg8: memref<64x128xf32, #tpu.memory_space<vmem>>, %arg9: memref<64x128xf32, #tpu.memory_space<vmem>>) attributes {dimension_semantics = [#tpu.dimension_semantics<arbitrary>], iteration_bounds = array<i64: 1>, scalar_prefetch = 0 : i64, scratch_operands = 1 : i64, tpu.core_type = #tpu.core_type<tc>, window_params = [{transform_indices = @transform_0, window_bounds = array<i64: 64, 1024>}, {transform_indices = @transform_1, window_bounds = array<i64: 1024, 128>}, {pipeline_mode = #tpu.pipeline_mode<synchronous>, transform_indices = @transform_2, window_bounds = array<i64: 2, 128>}, {pipeline_mode = #tpu.pipeline_mode<synchronous>, transform_indices = @transform_3, window_bounds = array<i64: 128, 128>}, {pipeline_mode = #tpu.pipeline_mode<synchronous>, transform_indices = @transform_4, window_bounds = array<i64: 2, 128>}, {pipeline_mode = #tpu.pipeline_mode<synchronous>, transform_indices = @transform_5, window_bounds = array<i64: 128, 128>}, {pipeline_mode = #tpu.pipeline_mode<synchronous>, transform_indices = @transform_6, window_bounds = array<i64: 1, 128>}, {pipeline_mode = #tpu.pipeline_mode<synchronous>, transform_indices = @transform_7, window_bounds = array<i64: 64, 128>}]} {
    %c0_i32 = arith.constant 0 : i32
    %0 = arith.cmpi eq, %arg0, %c0_i32 : i32
    %1 = arith.extui %0 : i1 to i32
    %c0_i32_0 = arith.constant 0 : i32
    %2 = arith.cmpi ne, %1, %c0_i32_0 : i32
    scf.if %2 {
      %cst_10 = arith.constant 0.000000e+00 : f32
      %13 = vector.broadcast %cst_10 : f32 to vector<64x128xf32>
      %c0_11 = arith.constant 0 : index
      %c0_12 = arith.constant 0 : index
      %14 = vector.load %arg9[%c0_11, %c0_12] : memref<64x128xf32, #tpu.memory_space<vmem>>, vector<64x128xf32>
      tpu.vector_store %arg9[%c0_11, %c0_12], %13 {strides = array<i32>} : memref<64x128xf32, #tpu.memory_space<vmem>>, vector<64x128xf32>,
    } else {
    }
    %c0 = arith.constant 0 : index
    %c0_1 = arith.constant 0 : index
    %3 = vector.load %arg9[%c0, %c0_1] : memref<64x128xf32, #tpu.memory_space<vmem>>, vector<64x128xf32>
    %c0_2 = arith.constant 0 : index
    %c0_3 = arith.constant 0 : index
    %4 = vector.load %arg1[%c0_2, %c0_3] : memref<64x1024xf32, #tpu.memory_space<vmem>>, vector<64x1024xf32>
    %5 = arith.truncf %4 : vector<64x1024xf32> to vector<64x1024xbf16>
    %c0_4 = arith.constant 0 : index
    %c0_5 = arith.constant 0 : index
    %6 = vector.load %arg2[%c0_4, %c0_5] : memref<1024x128xbf16, #tpu.memory_space<vmem>>, vector<1024x128xbf16>
    %cst = arith.constant dense<0.000000e+00> : vector<64x128xf32>
    %7 = tpu.matmul %5, %6, %cst {dimension_numbers = #tpu.dot_dimension_numbers<[1], [0], [0], [1], [0, 0, 1, 1], [], []>} : vector<64x1024xbf16>, vector<1024x128xbf16>, vector<64x128xf32> -> vector<64x128xf32>
    %8 = arith.addf %3, %7 : vector<64x128xf32>
    %c0_6 = arith.constant 0 : index
    %c0_7 = arith.constant 0 : index
    %9 = vector.load %arg9[%c0_6, %c0_7] : memref<64x128xf32, #tpu.memory_space<vmem>>, vector<64x128xf32>
    tpu.vector_store %arg9[%c0_6, %c0_7], %8 {strides = array<i32>} : memref<64x128xf32, #tpu.memory_space<vmem>>, vector<64x128xf32>,
    %c0_i32_8 = arith.constant 0 : i32
    %10 = arith.cmpi eq, %arg0, %c0_i32_8 : i32
    %11 = arith.extui %10 : i1 to i32
    %c0_i32_9 = arith.constant 0 : i32
    %12 = arith.cmpi ne, %11, %c0_i32_9 : i32
    scf.if %12 {
      %c0_10 = arith.constant 0 : index
      %c0_11 = arith.constant 0 : index
      %13 = vector.load %arg9[%c0_10, %c0_11] : memref<64x128xf32, #tpu.memory_space<vmem>>, vector<64x128xf32>
      %c0_12 = arith.constant 0 : index
      %c0_13 = arith.constant 0 : index
      %14 = vector.load %arg3[%c0_12, %c0_13] : memref<2x128xf32, #tpu.memory_space<vmem>>, vector<2x128xf32>
      %cst_14 = arith.constant dense<0.000000e+00> : vector<128xf32>
      %15 = vector.multi_reduction <add>, %13, %cst_14 [0] : vector<64x128xf32> to vector<128xf32>
      %16 = vector.shape_cast %15 : vector<128xf32> to vector<1x128xf32>
      %cst_15 = arith.constant 6.400000e+01 : f32
      %17 = vector.broadcast %cst_15 : f32 to vector<1x128xf32>
      %18 = arith.divf %16, %17 : vector<1x128xf32>
      %19 = vector.broadcast %18 : vector<1x128xf32> to vector<64x128xf32>
      %20 = arith.subf %13, %19 : vector<64x128xf32>
      %21 = arith.mulf %20, %20 : vector<64x128xf32>
      %cst_16 = arith.constant dense<0.000000e+00> : vector<128xf32>
      %22 = vector.multi_reduction <add>, %21, %cst_16 [0] : vector<64x128xf32> to vector<128xf32>
      %23 = vector.shape_cast %22 : vector<128xf32> to vector<1x128xf32>
      %cst_17 = arith.constant 6.400000e+01 : f32
      %24 = vector.broadcast %cst_17 : f32 to vector<1x128xf32>
      %25 = arith.divf %23, %24 : vector<1x128xf32>
      %26 = vector.broadcast %18 : vector<1x128xf32> to vector<64x128xf32>
      %27 = arith.subf %13, %26 : vector<64x128xf32>
      %cst_18 = arith.constant 9.99999974E-6 : f32
      %28 = vector.broadcast %cst_18 : f32 to vector<1x128xf32>
      %29 = arith.addf %25, %28 : vector<1x128xf32>
      %30 = math.rsqrt %29 : vector<1x128xf32>
      %31 = vector.broadcast %30 : vector<1x128xf32> to vector<64x128xf32>
      %32 = arith.mulf %27, %31 : vector<64x128xf32>
      %33 = vector.extract_strided_slice %14 {offsets = [0, 0], sizes = [1, 128], strides = [1, 1]} : vector<2x128xf32> to vector<1x128xf32>
      %34 = vector.broadcast %33 : vector<1x128xf32> to vector<64x128xf32>
      %35 = arith.mulf %32, %34 : vector<64x128xf32>
      %36 = vector.extract_strided_slice %14 {offsets = [1, 0], sizes = [1, 128], strides = [1, 1]} : vector<2x128xf32> to vector<1x128xf32>
      %37 = vector.broadcast %36 : vector<1x128xf32> to vector<64x128xf32>
      %38 = arith.addf %35, %37 : vector<64x128xf32>
      %cst_19 = arith.constant 0.000000e+00 : f32
      %39 = vector.broadcast %cst_19 : f32 to vector<64x128xf32>
      %40 = arith.maximumf %38, %39 : vector<64x128xf32>
      %41 = arith.truncf %40 : vector<64x128xf32> to vector<64x128xbf16>
      %c0_20 = arith.constant 0 : index
      %c0_21 = arith.constant 0 : index
      %42 = vector.load %arg4[%c0_20, %c0_21] : memref<128x128xbf16, #tpu.memory_space<vmem>>, vector<128x128xbf16>
      %cst_22 = arith.constant dense<0.000000e+00> : vector<64x128xf32>
      %43 = tpu.matmul %41, %42, %cst_22 {dimension_numbers = #tpu.dot_dimension_numbers<[1], [0], [0], [1], [0, 0, 1, 1], [], []>} : vector<64x128xbf16>, vector<128x128xbf16>, vector<64x128xf32> -> vector<64x128xf32>
      %c0_23 = arith.constant 0 : index
      %c0_24 = arith.constant 0 : index
      %44 = vector.load %arg5[%c0_23, %c0_24] : memref<2x128xf32, #tpu.memory_space<vmem>>, vector<2x128xf32>
      %cst_25 = arith.constant dense<0.000000e+00> : vector<128xf32>
      %45 = vector.multi_reduction <add>, %43, %cst_25 [0] : vector<64x128xf32> to vector<128xf32>
      %46 = vector.shape_cast %45 : vector<128xf32> to vector<1x128xf32>
      %cst_26 = arith.constant 6.400000e+01 : f32
      %47 = vector.broadcast %cst_26 : f32 to vector<1x128xf32>
      %48 = arith.divf %46, %47 : vector<1x128xf32>
      %49 = vector.broadcast %48 : vector<1x128xf32> to vector<64x128xf32>
      %50 = arith.subf %43, %49 : vector<64x128xf32>
      %51 = arith.mulf %50, %50 : vector<64x128xf32>
      %cst_27 = arith.constant dense<0.000000e+00> : vector<128xf32>
      %52 = vector.multi_reduction <add>, %51, %cst_27 [0] : vector<64x128xf32> to vector<128xf32>
      %53 = vector.shape_cast %52 : vector<128xf32> to vector<1x128xf32>
      %cst_28 = arith.constant 6.400000e+01 : f32
      %54 = vector.broadcast %cst_28 : f32 to vector<1x128xf32>
      %55 = arith.divf %53, %54 : vector<1x128xf32>
      %56 = vector.broadcast %48 : vector<1x128xf32> to vector<64x128xf32>
      %57 = arith.subf %43, %56 : vector<64x128xf32>
      %cst_29 = arith.constant 9.99999974E-6 : f32
      %58 = vector.broadcast %cst_29 : f32 to vector<1x128xf32>
      %59 = arith.addf %55, %58 : vector<1x128xf32>
      %60 = math.rsqrt %59 : vector<1x128xf32>
      %61 = vector.broadcast %60 : vector<1x128xf32> to vector<64x128xf32>
      %62 = arith.mulf %57, %61 : vector<64x128xf32>
      %63 = vector.extract_strided_slice %44 {offsets = [0, 0], sizes = [1, 128], strides = [1, 1]} : vector<2x128xf32> to vector<1x128xf32>
      %64 = vector.broadcast %63 : vector<1x128xf32> to vector<64x128xf32>
      %65 = arith.mulf %62, %64 : vector<64x128xf32>
      %66 = vector.extract_strided_slice %44 {offsets = [1, 0], sizes = [1, 128], strides = [1, 1]} : vector<2x128xf32> to vector<1x128xf32>
      %67 = vector.broadcast %66 : vector<1x128xf32> to vector<64x128xf32>
      %68 = arith.addf %65, %67 : vector<64x128xf32>
      %cst_30 = arith.constant 0.000000e+00 : f32
      %69 = vector.broadcast %cst_30 : f32 to vector<64x128xf32>
      %70 = arith.maximumf %68, %69 : vector<64x128xf32>
      %71 = arith.truncf %70 : vector<64x128xf32> to vector<64x128xbf16>
      %c0_31 = arith.constant 0 : index
      %c0_32 = arith.constant 0 : index
      %72 = vector.load %arg6[%c0_31, %c0_32] : memref<128x128xbf16, #tpu.memory_space<vmem>>, vector<128x128xbf16>
      %cst_33 = arith.constant dense<0.000000e+00> : vector<64x128xf32>
      %73 = tpu.matmul %71, %72, %cst_33 {dimension_numbers = #tpu.dot_dimension_numbers<[1], [0], [0], [1], [0, 0, 1, 1], [], []>} : vector<64x128xbf16>, vector<128x128xbf16>, vector<64x128xf32> -> vector<64x128xf32>
      %c0_34 = arith.constant 0 : index
      %c0_35 = arith.constant 0 : index
      %74 = vector.load %arg7[%c0_34, %c0_35] : memref<1x128xf32, #tpu.memory_space<vmem>>, vector<1x128xf32>
      %75 = vector.broadcast %74 : vector<1x128xf32> to vector<64x128xf32>
      %76 = arith.addf %73, %75 : vector<64x128xf32>
      %c0_36 = arith.constant 0 : index
      %c0_37 = arith.constant 0 : index
      %77 = vector.load %arg8[%c0_36, %c0_37] : memref<64x128xf32, #tpu.memory_space<vmem>>, vector<64x128xf32>
      tpu.vector_store %arg8[%c0_36, %c0_37], %76 {strides = array<i32>} : memref<64x128xf32, #tpu.memory_space<vmem>>, vector<64x128xf32>,
    } else {
    }
    return
  }
  func.func @transform_0(%arg0: i32) -> (i32, i32) {
    %c0_i32 = arith.constant 0 : i32
    %c0_i32_0 = arith.constant 0 : i32
    return %c0_i32, %arg0 : i32, i32
  }
  func.func @transform_1(%arg0: i32) -> (i32, i32) {
    %c0_i32 = arith.constant 0 : i32
    %c0_i32_0 = arith.constant 0 : i32
    return %arg0, %c0_i32 : i32, i32
  }
  func.func @transform_2(%arg0: i32) -> (i32, i32) {
    %c0_i32 = arith.constant 0 : i32
    %c0_i32_0 = arith.constant 0 : i32
    %c0_i32_1 = arith.constant 0 : i32
    return %c0_i32, %c0_i32_0 : i32, i32
  }
  func.func @transform_3(%arg0: i32) -> (i32, i32) {
    %c0_i32 = arith.constant 0 : i32
    %c0_i32_0 = arith.constant 0 : i32
    %c0_i32_1 = arith.constant 0 : i32
    return %c0_i32, %c0_i32_0 : i32, i32
  }
  func.func @transform_4(%arg0: i32) -> (i32, i32) {
    %c0_i32 = arith.constant 0 : i32
    %c0_i32_0 = arith.constant 0 : i32
    %c0_i32_1 = arith.constant 0 : i32
    return %c0_i32, %c0_i32_0 : i32, i32
  }
  func.func @transform_5(%arg0: i32) -> (i32, i32) {
    %c0_i32 = arith.constant 0 : i32
    %c0_i32_0 = arith.constant 0 : i32
    %c0_i32_1 = arith.constant 0 : i32
    return %c0_i32, %c0_i32_0 : i32, i32
  }
  func.func @transform_6(%arg0: i32) -> (i32, i32) {
    %c0_i32 = arith.constant 0 : i32
    %c0_i32_0 = arith.constant 0 : i32
    %c0_i32_1 = arith.constant 0 : i32
    return %c0_i32, %c0_i32_0 : i32, i32
  }
  func.func @transform_7(%arg0: i32) -> (i32, i32) {
    %c0_i32 = arith.constant 0 : i32
    %c0_i32_0 = arith.constant 0 : i32
    %c0_i32_1 = arith.constant 0 : i32
    return %c0_i32, %c0_i32_0 : i32, i32
  }
}

</mosaic_0001>

<llo_original>
// kernel: pytorch_mlp_forward.1
$region0: #{pytorch_mlp_forward.1}
  #allocation0 [shape = 'u32[]', space=smem, size = 0x4, offset = 0x4, fixed_abs, tag = 'smem constant byte address 0x4 - core index']
  #allocation1 [shape = 'u32[144,128]{1,0:T(1,128)}', space=vmem, size = 0x12000, scoped, tag = 'internal scratch']
  #allocation2 [shape = 'f32[64,128]{1,0:T(8,128)}', space=vmem, size = 0x8000, scoped, tag = 'scratch operand']
  %s0 = inlined_call_operand.vmem [shape: f32[64,1024], index: 0, kind: input, shape index: {}]
  %s1 = inlined_call_operand.vmem [shape: bf16[1024,128], index: 1, kind: input, shape index: {}]
  %s2 = inlined_call_operand.vmem [shape: f32[2,128], index: 2, kind: input, shape index: {}]
  %s3 = inlined_call_operand.vmem [shape: bf16[128,128], index: 3, kind: input, shape index: {}]
  %s4 = inlined_call_operand.vmem [shape: f32[2,128], index: 4, kind: input, shape index: {}]
  %s5 = inlined_call_operand.vmem [shape: bf16[128,128], index: 5, kind: input, shape index: {}]
  %s6 = inlined_call_operand.vmem [shape: f32[1,128], index: 6, kind: input, shape index: {}]
  %s7 = inlined_call_operand.vmem [shape: f32[64,128], index: 7, kind: output, shape index: {}]
  %s8 = sld [smem:[#allocation0]]
  $region46: #{pytorch_mlp_forward.1} parent=0
    _
  %s10 = ssub.s32 1, %s8
  %s11 = scalar_select 0, %s10, %s8
  // Predicated region
  $region2: #{pytorch_mlp_forward.1} parent=0 // pred_check
    _
  $region3: #{pytorch_mlp_forward.1} parent=0 // pred_check_branch
    %13 = sbr.rel (0) target = $region5
  $region4: #{pytorch_mlp_forward.1} parent=0 // pred_region
    _
  $region5: #{pytorch_mlp_forward.1} parent=0 // pred_fallthru
    _
  // Predicated region
  $region6: #{pytorch_mlp_forward.1} parent=0 // pred_check
    _
  $region7: #{pytorch_mlp_forward.1} parent=0 // pred_check_branch
    %15 = sbr.rel (0) target = $region9
  $region8: #{pytorch_mlp_forward.1} parent=0 // pred_region
    _
  $region9: #{pytorch_mlp_forward.1} parent=0 // pred_fallthru
    _
  // Predicated region
  $region10: #{pytorch_mlp_forward.1} parent=0 // pred_check
    _
  $region11: #{pytorch_mlp_forward.1} parent=0 // pred_check_branch
    %17 = sbr.rel (0) target = $region13
  $region12: #{pytorch_mlp_forward.1} parent=0 // pred_region
    _
  $region13: #{pytorch_mlp_forward.1} parent=0 // pred_fallthru
    _
  // Predicated region
  $region14: #{pytorch_mlp_forward.1} parent=0 // pred_check
    _
  $region15: #{pytorch_mlp_forward.1} parent=0 // pred_check_branch
    %19 = sbr.rel (0) target = $region17
  $region16: #{pytorch_mlp_forward.1} parent=0 // pred_region
    _
  $region17: #{pytorch_mlp_forward.1} parent=0 // pred_fallthru
    _
  // Predicated region
  $region18: #{pytorch_mlp_forward.1} parent=0 // pred_check
    _
  $region19: #{pytorch_mlp_forward.1} parent=0 // pred_check_branch
    %21 = sbr.rel (0) target = $region21
  $region20: #{pytorch_mlp_forward.1} parent=0 // pred_region
    _
  $region21: #{pytorch_mlp_forward.1} parent=0 // pred_fallthru
    _
  // Predicated region
  $region22: #{pytorch_mlp_forward.1} parent=0 // pred_check
    _
  $region23: #{pytorch_mlp_forward.1} parent=0 // pred_check_branch
    %23 = sbr.rel (0) target = $region25
  $region24: #{pytorch_mlp_forward.1} parent=0 // pred_region
    _
  $region25: #{pytorch_mlp_forward.1} parent=0 // pred_fallthru
    _
  // Predicated region
  $region26: #{pytorch_mlp_forward.1} parent=0 // pred_check
    _
  $region27: #{pytorch_mlp_forward.1} parent=0 // pred_check_branch
    %25 = sbr.rel (0) target = $region29
  $region28: #{pytorch_mlp_forward.1} parent=0 // pred_region
    _
  $region29: #{pytorch_mlp_forward.1} parent=0 // pred_fallthru
    _
  %p27 = scmp.eq.s32.totalorder 0, 0
  // Predicated region
  $region30: #{pytorch_mlp_forward.1} parent=0 // pred_check
    %p28 = pneg %p27
  $region31: #{pytorch_mlp_forward.1} parent=0 // pred_check_branch
    %30 = sbr.rel (%p28) target = $region33
  $region32: #{pytorch_mlp_forward.1} parent=0 // pred_region
    %31 = vst [vmem:[#allocation2] sm:$0xff] 0.0
    %32 = vst [vmem:[#allocation2 + $0x8] sm:$0xff] 0.0
    %33 = vst [vmem:[#allocation2 + $0x10] sm:$0xff] 0.0
    %34 = vst [vmem:[#allocation2 + $0x18] sm:$0xff] 0.0
    %35 = vst [vmem:[#allocation2 + $0x20] sm:$0xff] 0.0
    %36 = vst [vmem:[#allocation2 + $0x28] sm:$0xff] 0.0
    %37 = vst [vmem:[#allocation2 + $0x30] sm:$0xff] 0.0
    %38 = vst [vmem:[#allocation2 + $0x38] sm:$0xff] 0.0
  $region33: #{pytorch_mlp_forward.1} parent=0 // pred_fallthru
    _
  %v39 = vld [vmem:[#allocation2] sm:$0xff]
  %v40 = vld [vmem:[#allocation2 + $0x8] sm:$0xff]
  %v41 = vld [vmem:[#allocation2 + $0x10] sm:$0xff]
  %v42 = vld [vmem:[#allocation2 + $0x18] sm:$0xff]
  %v43 = vld [vmem:[#allocation2 + $0x20] sm:$0xff]
  %v44 = vld [vmem:[#allocation2 + $0x28] sm:$0xff]
  %v45 = vld [vmem:[#allocation2 + $0x30] sm:$0xff]
  %v46 = vld [vmem:[#allocation2 + $0x38] sm:$0xff]
  %v47 = vld [vmem:[%s0] sm:$0xff]
  %v48 = vld [vmem:[%s0 + $0x8] sm:$0xff]
  %v49 = vld [vmem:[%s0 + $0x10] sm:$0xff]
  %v50 = vld [vmem:[%s0 + $0x18] sm:$0xff]
  %v51 = vld [vmem:[%s0 + $0x20] sm:$0xff]
  %v52 = vld [vmem:[%s0 + $0x28] sm:$0xff]
  %v53 = vld [vmem:[%s0 + $0x30] sm:$0xff]
  %v54 = vld [vmem:[%s0 + $0x38] sm:$0xff]
  %v55 = vld [vmem:[%s0 + $0x40] sm:$0xff]
  %v56 = vld [vmem:[%s0 + $0x48] sm:$0xff]
  %v57 = vld [vmem:[%s0 + $0x50] sm:$0xff]
  %v58 = vld [vmem:[%s0 + $0x58] sm:$0xff]
  %v59 = vld [vmem:[%s0 + $0x60] sm:$0xff]
  %v60 = vld [vmem:[%s0 + $0x68] sm:$0xff]
  %v61 = vld [vmem:[%s0 + $0x70] sm:$0xff]
  %v62 = vld [vmem:[%s0 + $0x78] sm:$0xff]
  %v63 = vld [vmem:[%s0 + $0x80] sm:$0xff]
  %v64 = vld [vmem:[%s0 + $0x88] sm:$0xff]
  %v65 = vld [vmem:[%s0 + $0x90] sm:$0xff]
  %v66 = vld [vmem:[%s0 + $0x98] sm:$0xff]
  %v67 = vld [vmem:[%s0 + $0xa0] sm:$0xff]
  %v68 = vld [vmem:[%s0 + $0xa8] sm:$0xff]
  %v69 = vld [vmem:[%s0 + $0xb0] sm:$0xff]
  %v70 = vld [vmem:[%s0 + $0xb8] sm:$0xff]
  %v71 = vld [vmem:[%s0 + $0xc0] sm:$0xff]
  %v72 = vld [vmem:[%s0 + $0xc8] sm:$0xff]
  %v73 = vld [vmem:[%s0 + $0xd0] sm:$0xff]
  %v74 = vld [vmem:[%s0 + $0xd8] sm:$0xff]
  %v75 = vld [vmem:[%s0 + $0xe0] sm:$0xff]
  %v76 = vld [vmem:[%s0 + $0xe8] sm:$0xff]
  %v77 = vld [vmem:[%s0 + $0xf0] sm:$0xff]
  %v78 = vld [vmem:[%s0 + $0xf8] sm:$0xff]
  %v79 = vld [vmem:[%s0 + $0x100] sm:$0xff]
  %v80 = vld [vmem:[%s0 + $0x108] sm:$0xff]
  %v81 = vld [vmem:[%s0 + $0x110] sm:$0xff]
  %v82 = vld [vmem:[%s0 + $0x118] sm:$0xff]
  %v83 = vld [vmem:[%s0 + $0x120] sm:$0xff]
  %v84 = vld [vmem:[%s0 + $0x128] sm:$0xff]
  %v85 = vld [vmem:[%s0 + $0x130] sm:$0xff]
  %v86 = vld [vmem:[%s0 + $0x138] sm:$0xff]
  %v87 = vld [vmem:[%s0 + $0x140] sm:$0xff]
  %v88 = vld [vmem:[%s0 + $0x148] sm:$0xff]
  %v89 = vld [vmem:[%s0 + $0x150] sm:$0xff]
  %v90 = vld [vmem:[%s0 + $0x158] sm:$0xff]
  %v91 = vld [vmem:[%s0 + $0x160] sm:$0xff]
  %v92 = vld [vmem:[%s0 + $0x168] sm:$0xff]
  %v93 = vld [vmem:[%s0 + $0x170] sm:$0xff]
  %v94 = vld [vmem:[%s0 + $0x178] sm:$0xff]
  %v95 = vld [vmem:[%s0 + $0x180] sm:$0xff]
  %v96 = vld [vmem:[%s0 + $0x188] sm:$0xff]
  %v97 = vld [vmem:[%s0 + $0x190] sm:$0xff]
  %v98 = vld [vmem:[%s0 + $0x198] sm:$0xff]
  %v99 = vld [vmem:[%s0 + $0x1a0] sm:$0xff]
  %v100 = vld [vmem:[%s0 + $0x1a8] sm:$0xff]
  %v101 = vld [vmem:[%s0 + $0x1b0] sm:$0xff]
  %v102 = vld [vmem:[%s0 + $0x1b8] sm:$0xff]
  %v103 = vld [vmem:[%s0 + $0x1c0] sm:$0xff]
  %v104 = vld [vmem:[%s0 + $0x1c8] sm:$0xff]
  %v105 = vld [vmem:[%s0 + $0x1d0] sm:$0xff]
  %v106 = vld [vmem:[%s0 + $0x1d8] sm:$0xff]
  %v107 = vld [vmem:[%s0 + $0x1e0] sm:$0xff]
  %v108 = vld [vmem:[%s0 + $0x1e8] sm:$0xff]
  %v109 = vld [vmem:[%s0 + $0x1f0] sm:$0xff]
  %v110 = vld [vmem:[%s0 + $0x1f8] sm:$0xff]
  %v111 = vpack.c.bf16 %v55, %v47
  %v112 = vpack.c.bf16 %v56, %v48
  %v113 = vpack.c.bf16 %v57, %v49
  %v114 = vpack.c.bf16 %v58, %v50
  %v115 = vpack.c.bf16 %v59, %v51
  %v116 = vpack.c.bf16 %v60, %v52
  %v117 = vpack.c.bf16 %v61, %v53
  %v118 = vpack.c.bf16 %v62, %v54
  %v119 = vpack.c.bf16 %v71, %v63
  %v120 = vpack.c.bf16 %v72, %v64
  %v121 = vpack.c.bf16 %v73, %v65
  %v122 = vpack.c.bf16 %v74, %v66
  %v123 = vpack.c.bf16 %v75, %v67
  %v124 = vpack.c.bf16 %v76, %v68
  %v125 = vpack.c.bf16 %v77, %v69
  %v126 = vpack.c.bf16 %v78, %v70
  %v127 = vpack.c.bf16 %v87, %v79
  %v128 = vpack.c.bf16 %v88, %v80
  %v129 = vpack.c.bf16 %v89, %v81
  %v130 = vpack.c.bf16 %v90, %v82
  %v131 = vpack.c.bf16 %v91, %v83
  %v132 = vpack.c.bf16 %v92, %v84
  %v133 = vpack.c.bf16 %v93, %v85
  %v134 = vpack.c.bf16 %v94, %v86
  %v135 = vpack.c.bf16 %v103, %v95
  %v136 = vpack.c.bf16 %v104, %v96
  %v137 = vpack.c.bf16 %v105, %v97
  %v138 = vpack.c.bf16 %v106, %v98
  %v139 = vpack.c.bf16 %v107, %v99
  %v140 = vpack.c.bf16 %v108, %v100
  %v141 = vpack.c.bf16 %v109, %v101
  %v142 = vpack.c.bf16 %v110, %v102
  %v143 = vld [vmem:[%s1] sm:$0xf]
  %v144 = vld [vmem:[%s1 + $0x4] sm:$0xf]
  %v145 = vld [vmem:[%s1 + $0x8] sm:$0xf]
  %v146 = vld [vmem:[%s1 + $0xc] sm:$0xf]
  %v147 = vld [vmem:[%s1 + $0x10] sm:$0xf]
  %v148 = vld [vmem:[%s1 + $0x14] sm:$0xf]
  %v149 = vld [vmem:[%s1 + $0x18] sm:$0xf]
  %v150 = vld [vmem:[%s1 + $0x1c] sm:$0xf]
  %v151 = vld [vmem:[%s1 + $0x20] sm:$0xf]
  %v152 = vld [vmem:[%s1 + $0x24] sm:$0xf]
  %v153 = vld [vmem:[%s1 + $0x28] sm:$0xf]
  %v154 = vld [vmem:[%s1 + $0x2c] sm:$0xf]
  %v155 = vld [vmem:[%s1 + $0x30] sm:$0xf]
  %v156 = vld [vmem:[%s1 + $0x34] sm:$0xf]
  %v157 = vld [vmem:[%s1 + $0x38] sm:$0xf]
  %v158 = vld [vmem:[%s1 + $0x3c] sm:$0xf]
  %v159 = vld [vmem:[%s1 + $0x40] sm:$0xf]
  %v160 = vld [vmem:[%s1 + $0x44] sm:$0xf]
  %v161 = vld [vmem:[%s1 + $0x48] sm:$0xf]
  %v162 = vld [vmem:[%s1 + $0x4c] sm:$0xf]
  %v163 = vld [vmem:[%s1 + $0x50] sm:$0xf]
  %v164 = vld [vmem:[%s1 + $0x54] sm:$0xf]
  %v165 = vld [vmem:[%s1 + $0x58] sm:$0xf]
  %v166 = vld [vmem:[%s1 + $0x5c] sm:$0xf]
  %v167 = vld [vmem:[%s1 + $0x60] sm:$0xf]
  %v168 = vld [vmem:[%s1 + $0x64] sm:$0xf]
  %v169 = vld [vmem:[%s1 + $0x68] sm:$0xf]
  %v170 = vld [vmem:[%s1 + $0x6c] sm:$0xf]
  %v171 = vld [vmem:[%s1 + $0x70] sm:$0xf]
  %v172 = vld [vmem:[%s1 + $0x74] sm:$0xf]
  %v173 = vld [vmem:[%s1 + $0x78] sm:$0xf]
  %v174 = vld [vmem:[%s1 + $0x7c] sm:$0xf]
  %v175 = vld [vmem:[%s1 + $0x80] sm:$0xf]
  %v176 = vld [vmem:[%s1 + $0x84] sm:$0xf]
  %v177 = vld [vmem:[%s1 + $0x88] sm:$0xf]
  %v178 = vld [vmem:[%s1 + $0x8c] sm:$0xf]
  %v179 = vld [vmem:[%s1 + $0x90] sm:$0xf]
  %v180 = vld [vmem:[%s1 + $0x94] sm:$0xf]
  %v181 = vld [vmem:[%s1 + $0x98] sm:$0xf]
  %v182 = vld [vmem:[%s1 + $0x9c] sm:$0xf]
  %v183 = vld [vmem:[%s1 + $0xa0] sm:$0xf]
  %v184 = vld [vmem:[%s1 + $0xa4] sm:$0xf]
  %v185 = vld [vmem:[%s1 + $0xa8] sm:$0xf]
  %v186 = vld [vmem:[%s1 + $0xac] sm:$0xf]
  %v187 = vld [vmem:[%s1 + $0xb0] sm:$0xf]
  %v188 = vld [vmem:[%s1 + $0xb4] sm:$0xf]
  %v189 = vld [vmem:[%s1 + $0xb8] sm:$0xf]
  %v190 = vld [vmem:[%s1 + $0xbc] sm:$0xf]
  %v191 = vld [vmem:[%s1 + $0xc0] sm:$0xf]
  %v192 = vld [vmem:[%s1 + $0xc4] sm:$0xf]
  %v193 = vld [vmem:[%s1 + $0xc8] sm:$0xf]
  %v194 = vld [vmem:[%s1 + $0xcc] sm:$0xf]
  %v195 = vld [vmem:[%s1 + $0xd0] sm:$0xf]
  %v196 = vld [vmem:[%s1 + $0xd4] sm:$0xf]
  %v197 = vld [vmem:[%s1 + $0xd8] sm:$0xf]
  %v198 = vld [vmem:[%s1 + $0xdc] sm:$0xf]
  %v199 = vld [vmem:[%s1 + $0xe0] sm:$0xf]
  %v200 = vld [vmem:[%s1 + $0xe4] sm:$0xf]
  %v201 = vld [vmem:[%s1 + $0xe8] sm:$0xf]
  %v202 = vld [vmem:[%s1 + $0xec] sm:$0xf]
  %v203 = vld [vmem:[%s1 + $0xf0] sm:$0xf]
  %v204 = vld [vmem:[%s1 + $0xf4] sm:$0xf]
  %v205 = vld [vmem:[%s1 + $0xf8] sm:$0xf]
  %v206 = vld [vmem:[%s1 + $0xfc] sm:$0xf]
  %v207 = vld [vmem:[%s1 + $0x100] sm:$0xf]
  %v208 = vld [vmem:[%s1 + $0x104] sm:$0xf]
  %v209 = vld [vmem:[%s1 + $0x108] sm:$0xf]
  %v210 = vld [vmem:[%s1 + $0x10c] sm:$0xf]
  %v211 = vld [vmem:[%s1 + $0x110] sm:$0xf]
  %v212 = vld [vmem:[%s1 + $0x114] sm:$0xf]
  %v213 = vld [vmem:[%s1 + $0x118] sm:$0xf]
  %v214 = vld [vmem:[%s1 + $0x11c] sm:$0xf]
  %v215 = vld [vmem:[%s1 + $0x120] sm:$0xf]
  %v216 = vld [vmem:[%s1 + $0x124] sm:$0xf]
  %v217 = vld [vmem:[%s1 + $0x128] sm:$0xf]
  %v218 = vld [vmem:[%s1 + $0x12c] sm:$0xf]
  %v219 = vld [vmem:[%s1 + $0x130] sm:$0xf]
  %v220 = vld [vmem:[%s1 + $0x134] sm:$0xf]
  %v221 = vld [vmem:[%s1 + $0x138] sm:$0xf]
  %v222 = vld [vmem:[%s1 + $0x13c] sm:$0xf]
  %v223 = vld [vmem:[%s1 + $0x140] sm:$0xf]
  %v224 = vld [vmem:[%s1 + $0x144] sm:$0xf]
  %v225 = vld [vmem:[%s1 + $0x148] sm:$0xf]
  %v226 = vld [vmem:[%s1 + $0x14c] sm:$0xf]
  %v227 = vld [vmem:[%s1 + $0x150] sm:$0xf]
  %v228 = vld [vmem:[%s1 + $0x154] sm:$0xf]
  %v229 = vld [vmem:[%s1 + $0x158] sm:$0xf]
  %v230 = vld [vmem:[%s1 + $0x15c] sm:$0xf]
  %v231 = vld [vmem:[%s1 + $0x160] sm:$0xf]
  %v232 = vld [vmem:[%s1 + $0x164] sm:$0xf]
  %v233 = vld [vmem:[%s1 + $0x168] sm:$0xf]
  %v234 = vld [vmem:[%s1 + $0x16c] sm:$0xf]
  %v235 = vld [vmem:[%s1 + $0x170] sm:$0xf]
  %v236 = vld [vmem:[%s1 + $0x174] sm:$0xf]
  %v237 = vld [vmem:[%s1 + $0x178] sm:$0xf]
  %v238 = vld [vmem:[%s1 + $0x17c] sm:$0xf]
  %v239 = vld [vmem:[%s1 + $0x180] sm:$0xf]
  %v240 = vld [vmem:[%s1 + $0x184] sm:$0xf]
  %v241 = vld [vmem:[%s1 + $0x188] sm:$0xf]
  %v242 = vld [vmem:[%s1 + $0x18c] sm:$0xf]
  %v243 = vld [vmem:[%s1 + $0x190] sm:$0xf]
  %v244 = vld [vmem:[%s1 + $0x194] sm:$0xf]
  %v245 = vld [vmem:[%s1 + $0x198] sm:$0xf]
  %v246 = vld [vmem:[%s1 + $0x19c] sm:$0xf]
  %v247 = vld [vmem:[%s1 + $0x1a0] sm:$0xf]
  %v248 = vld [vmem:[%s1 + $0x1a4] sm:$0xf]
  %v249 = vld [vmem:[%s1 + $0x1a8] sm:$0xf]
  %v250 = vld [vmem:[%s1 + $0x1ac] sm:$0xf]
  %v251 = vld [vmem:[%s1 + $0x1b0] sm:$0xf]
  %v252 = vld [vmem:[%s1 + $0x1b4] sm:$0xf]
  %v253 = vld [vmem:[%s1 + $0x1b8] sm:$0xf]
  %v254 = vld [vmem:[%s1 + $0x1bc] sm:$0xf]
  %v255 = vld [vmem:[%s1 + $0x1c0] sm:$0xf]
  %v256 = vld [vmem:[%s1 + $0x1c4] sm:$0xf]
  %v257 = vld [vmem:[%s1 + $0x1c8] sm:$0xf]
  %v258 = vld [vmem:[%s1 + $0x1cc] sm:$0xf]
  %v259 = vld [vmem:[%s1 + $0x1d0] sm:$0xf]
  %v260 = vld [vmem:[%s1 + $0x1d4] sm:$0xf]
  %v261 = vld [vmem:[%s1 + $0x1d8] sm:$0xf]
  %v262 = vld [vmem:[%s1 + $0x1dc] sm:$0xf]
  %v263 = vld [vmem:[%s1 + $0x1e0] sm:$0xf]
  %v264 = vld [vmem:[%s1 + $0x1e4] sm:$0xf]
  %v265 = vld [vmem:[%s1 + $0x1e8] sm:$0xf]
  %v266 = vld [vmem:[%s1 + $0x1ec] sm:$0xf]
  %v267 = vld [vmem:[%s1 + $0x1f0] sm:$0xf]
  %v268 = vld [vmem:[%s1 + $0x1f4] sm:$0xf]
  %v269 = vld [vmem:[%s1 + $0x1f8] sm:$0xf]
  %v270 = vld [vmem:[%s1 + $0x1fc] sm:$0xf]
  %v399 = vunpack.c.l.b16 %v143
  %v400 = vunpack.c.l.b16 %v144
  %v401 = vunpack.c.l.b16 %v145
  %v402 = vunpack.c.l.b16 %v146
  %v403 = vunpack.c.l.b16 %v147
  %v404 = vunpack.c.l.b16 %v148
  %v405 = vunpack.c.l.b16 %v149
  %v406 = vunpack.c.l.b16 %v150
  %v407 = vunpack.c.l.b16 %v151
  %v408 = vunpack.c.l.b16 %v152
  %v409 = vunpack.c.l.b16 %v153
  %v410 = vunpack.c.l.b16 %v154
  %v411 = vunpack.c.l.b16 %v155
  %v412 = vunpack.c.l.b16 %v156
  %v413 = vunpack.c.l.b16 %v157
  %v414 = vunpack.c.l.b16 %v158
  %v415 = vunpack.c.l.b16 %v159
  %v416 = vunpack.c.l.b16 %v160
  %v417 = vunpack.c.l.b16 %v161
  %v418 = vunpack.c.l.b16 %v162
  %v419 = vunpack.c.l.b16 %v163
  %v420 = vunpack.c.l.b16 %v164
  %v421 = vunpack.c.l.b16 %v165
  %v422 = vunpack.c.l.b16 %v166
  %v423 = vunpack.c.l.b16 %v167
  %v424 = vunpack.c.l.b16 %v168
  %v425 = vunpack.c.l.b16 %v169
  %v426 = vunpack.c.l.b16 %v170
  %v427 = vunpack.c.l.b16 %v171
  %v428 = vunpack.c.l.b16 %v172
  %v429 = vunpack.c.l.b16 %v173
  %v430 = vunpack.c.l.b16 %v174
  %v431 = vunpack.c.l.b16 %v175
  %v432 = vunpack.c.l.b16 %v176
  %v433 = vunpack.c.l.b16 %v177
  %v434 = vunpack.c.l.b16 %v178
  %v435 = vunpack.c.l.b16 %v179
  %v436 = vunpack.c.l.b16 %v180
  %v437 = vunpack.c.l.b16 %v181
  %v438 = vunpack.c.l.b16 %v182
  %v439 = vunpack.c.l.b16 %v183
  %v440 = vunpack.c.l.b16 %v184
  %v441 = vunpack.c.l.b16 %v185
  %v442 = vunpack.c.l.b16 %v186
  %v443 = vunpack.c.l.b16 %v187
  %v444 = vunpack.c.l.b16 %v188
  %v445 = vunpack.c.l.b16 %v189
  %v446 = vunpack.c.l.b16 %v190
  %v447 = vunpack.c.l.b16 %v191
  %v448 = vunpack.c.l.b16 %v192
  %v449 = vunpack.c.l.b16 %v193
  %v450 = vunpack.c.l.b16 %v194
  %v451 = vunpack.c.l.b16 %v195
  %v452 = vunpack.c.l.b16 %v196
  %v453 = vunpack.c.l.b16 %v197
  %v454 = vunpack.c.l.b16 %v198
  %v455 = vunpack.c.l.b16 %v199
  %v456 = vunpack.c.l.b16 %v200
  %v457 = vunpack.c.l.b16 %v201
  %v458 = vunpack.c.l.b16 %v202
  %v459 = vunpack.c.l.b16 %v203
  %v460 = vunpack.c.l.b16 %v204
  %v461 = vunpack.c.l.b16 %v205
  %v462 = vunpack.c.l.b16 %v206
  %v463 = vunpack.c.l.b16 %v207
  %v464 = vunpack.c.l.b16 %v208
  %v465 = vunpack.c.l.b16 %v209
  %v466 = vunpack.c.l.b16 %v210
  %v467 = vunpack.c.l.b16 %v211
  %v468 = vunpack.c.l.b16 %v212
  %v469 = vunpack.c.l.b16 %v213
  %v470 = vunpack.c.l.b16 %v214
  %v471 = vunpack.c.l.b16 %v215
  %v472 = vunpack.c.l.b16 %v216
  %v473 = vunpack.c.l.b16 %v217
  %v474 = vunpack.c.l.b16 %v218
  %v475 = vunpack.c.l.b16 %v219
  %v476 = vunpack.c.l.b16 %v220
  %v477 = vunpack.c.l.b16 %v221
  %v478 = vunpack.c.l.b16 %v222
  %v479 = vunpack.c.l.b16 %v223
  %v480 = vunpack.c.l.b16 %v224
  %v481 = vunpack.c.l.b16 %v225
  %v482 = vunpack.c.l.b16 %v226
  %v483 = vunpack.c.l.b16 %v227
  %v484 = vunpack.c.l.b16 %v228
  %v485 = vunpack.c.l.b16 %v229
  %v486 = vunpack.c.l.b16 %v230
  %v487 = vunpack.c.l.b16 %v231
  %v488 = vunpack.c.l.b16 %v232
  %v489 = vunpack.c.l.b16 %v233
  %v490 = vunpack.c.l.b16 %v234
  %v491 = vunpack.c.l.b16 %v235
  %v492 = vunpack.c.l.b16 %v236
  %v493 = vunpack.c.l.b16 %v237
  %v494 = vunpack.c.l.b16 %v238
  %v495 = vunpack.c.l.b16 %v239
  %v496 = vunpack.c.l.b16 %v240
  %v497 = vunpack.c.l.b16 %v241
  %v498 = vunpack.c.l.b16 %v242
  %v499 = vunpack.c.l.b16 %v243
  %v500 = vunpack.c.l.b16 %v244
  %v501 = vunpack.c.l.b16 %v245
  %v502 = vunpack.c.l.b16 %v246
  %v503 = vunpack.c.l.b16 %v247
  %v504 = vunpack.c.l.b16 %v248
  %v505 = vunpack.c.l.b16 %v249
  %v506 = vunpack.c.l.b16 %v250
  %v507 = vunpack.c.l.b16 %v251
  %v508 = vunpack.c.l.b16 %v252
  %v509 = vunpack.c.l.b16 %v253
  %v510 = vunpack.c.l.b16 %v254
  %v511 = vunpack.c.l.b16 %v255
  %v512 = vunpack.c.l.b16 %v256
  %v513 = vunpack.c.l.b16 %v257
  %v514 = vunpack.c.l.b16 %v258
  %v515 = vunpack.c.l.b16 %v259
  %v516 = vunpack.c.l.b16 %v260
  %v517 = vunpack.c.l.b16 %v261
  %v518 = vunpack.c.l.b16 %v262
  %v519 = vunpack.c.l.b16 %v263
  %v520 = vunpack.c.l.b16 %v264
  %v521 = vunpack.c.l.b16 %v265
  %v522 = vunpack.c.l.b16 %v266
  %v523 = vunpack.c.l.b16 %v267
  %v524 = vunpack.c.l.b16 %v268
  %v525 = vunpack.c.l.b16 %v269
  %v526 = vunpack.c.l.b16 %v270
  %v527 = vpack.c.b16 %v400, %v399
  %v528 = vpack.c.b16 %v402, %v401
  %v529 = vpack.c.b16 %v404, %v403
  %v530 = vpack.c.b16 %v406, %v405
  %v531 = vpack.c.b16 %v408, %v407
  %v532 = vpack.c.b16 %v410, %v409
  %v533 = vpack.c.b16 %v412, %v411
  %v534 = vpack.c.b16 %v414, %v413
  %v535 = vpack.c.b16 %v416, %v415
  %v536 = vpack.c.b16 %v418, %v417
  %v537 = vpack.c.b16 %v420, %v419
  %v538 = vpack.c.b16 %v422, %v421
  %v539 = vpack.c.b16 %v424, %v423
  %v540 = vpack.c.b16 %v426, %v425
  %v541 = vpack.c.b16 %v428, %v427
  %v542 = vpack.c.b16 %v430, %v429
  %v543 = vpack.c.b16 %v432, %v431
  %v544 = vpack.c.b16 %v434, %v433
  %v545 = vpack.c.b16 %v436, %v435
  %v546 = vpack.c.b16 %v438, %v437
  %v547 = vpack.c.b16 %v440, %v439
  %v548 = vpack.c.b16 %v442, %v441
  %v549 = vpack.c.b16 %v444, %v443
  %v550 = vpack.c.b16 %v446, %v445
  %v551 = vpack.c.b16 %v448, %v447
  %v552 = vpack.c.b16 %v450, %v449
  %v553 = vpack.c.b16 %v452, %v451
  %v554 = vpack.c.b16 %v454, %v453
  %v555 = vpack.c.b16 %v456, %v455
  %v556 = vpack.c.b16 %v458, %v457
  %v557 = vpack.c.b16 %v460, %v459
  %v558 = vpack.c.b16 %v462, %v461
  %v559 = vpack.c.b16 %v464, %v463
  %v560 = vpack.c.b16 %v466, %v465
  %v561 = vpack.c.b16 %v468, %v467
  %v562 = vpack.c.b16 %v470, %v469
  %v563 = vpack.c.b16 %v472, %v471
  %v564 = vpack.c.b16 %v474, %v473
  %v565 = vpack.c.b16 %v476, %v475
  %v566 = vpack.c.b16 %v478, %v477
  %v567 = vpack.c.b16 %v480, %v479
  %v568 = vpack.c.b16 %v482, %v481
  %v569 = vpack.c.b16 %v484, %v483
  %v570 = vpack.c.b16 %v486, %v485
  %v571 = vpack.c.b16 %v488, %v487
  %v572 = vpack.c.b16 %v490, %v489
  %v573 = vpack.c.b16 %v492, %v491
  %v574 = vpack.c.b16 %v494, %v493
  %v575 = vpack.c.b16 %v496, %v495
  %v576 = vpack.c.b16 %v498, %v497
  %v577 = vpack.c.b16 %v500, %v499
  %v578 = vpack.c.b16 %v502, %v501
  %v579 = vpack.c.b16 %v504, %v503
  %v580 = vpack.c.b16 %v506, %v505
  %v581 = vpack.c.b16 %v508, %v507
  %v582 = vpack.c.b16 %v510, %v509
  %v583 = vpack.c.b16 %v512, %v511
  %v584 = vpack.c.b16 %v514, %v513
  %v585 = vpack.c.b16 %v516, %v515
  %v586 = vpack.c.b16 %v518, %v517
  %v587 = vpack.c.b16 %v520, %v519
  %v588 = vpack.c.b16 %v522, %v521
  %v589 = vpack.c.b16 %v524, %v523
  %v590 = vpack.c.b16 %v526, %v525
  %655 = vmatprep.subr.bf16.mxu0 0
  %656 = vmatpush1.bf16.msra.mxu0 %v534
  %657 = vmatprep.subr.bf16.mxu0 0
  %658 = vmatpush1.bf16.msra.mxu0 %v533
  %659 = vmatprep.subr.bf16.mxu0 0
  %660 = vmatpush1.bf16.msra.mxu0 %v532
  %661 = vmatprep.subr.bf16.mxu0 0
  %662 = vmatpush1.bf16.msra.mxu0 %v531
  %663 = vmatprep.subr.bf16.mxu0 0
  %664 = vmatpush1.bf16.msra.mxu0 %v530
  %665 = vmatprep.subr.bf16.mxu0 0
  %666 = vmatpush1.bf16.msra.mxu0 %v529
  %667 = vmatprep.subr.bf16.mxu0 0
  %668 = vmatpush1.bf16.msra.mxu0 %v528
  %669 = vmatprep.subr.bf16.mxu0 0
  %670 = vmatpush1.bf16.msra.mxu0 %v527
  %671 = vmatprep.subr.bf16.mxu0 0
  %672 = vmatpush2.bf16.msra.mxu0 %v542
  %673 = vmatprep.subr.bf16.mxu0 0
  %674 = vmatpush2.bf16.msra.mxu0 %v541
  %675 = vmatprep.subr.bf16.mxu0 0
  %676 = vmatpush2.bf16.msra.mxu0 %v540
  %677 = vmatprep.subr.bf16.mxu0 0
  %678 = vmatpush2.bf16.msra.mxu0 %v539
  %679 = vmatprep.subr.bf16.mxu0 0
  %680 = vmatpush2.bf16.msra.mxu0 %v538
  %681 = vmatprep.subr.bf16.mxu0 0
  %682 = vmatpush2.bf16.msra.mxu0 %v537
  %683 = vmatprep.subr.bf16.mxu0 0
  %684 = vmatpush2.bf16.msra.mxu0 %v536
  %685 = vmatprep.subr.bf16.mxu0 0
  %686 = vmatpush2.bf16.msra.mxu0 %v535
  %687 = vmatprep.mubr.bf16.mxu0 %v112
  %688 = vmatmul.mubr.bf16.gmra.mxu0 %v111
  %v689 = vpop.f32.mrf.mxu0
  %v690 = vadd.f32 0.0, %v689
  %v691 = vpop.f32.mrf.mxu0
  %v692 = vpop.f32.mrf.mxu0
  %v693 = vadd.f32 0.0, %v692
  %v694 = vpop.f32.mrf.mxu0
  %695 = vmatprep.mubr.bf16.mxu0 %v120
  %696 = vmatmul.mubr.bf16.gmra.mxu0 %v119
  %v697 = vpop.f32.mrf.mxu0
  %v698 = vadd.f32 0.0, %v697
  %v699 = vpop.f32.mrf.mxu0
  %v700 = vpop.f32.mrf.mxu0
  %v701 = vadd.f32 0.0, %v700
  %v702 = vpop.f32.mrf.mxu0
  %703 = vmatprep.mubr.bf16.mxu0 %v128
  %704 = vmatmul.mubr.bf16.gmra.mxu0 %v127
  %v705 = vpop.f32.mrf.mxu0
  %v706 = vadd.f32 0.0, %v705
  %v707 = vpop.f32.mrf.mxu0
  %v708 = vpop.f32.mrf.mxu0
  %v709 = vadd.f32 0.0, %v708
  %v710 = vpop.f32.mrf.mxu0
  %711 = vmatprep.mubr.bf16.mxu0 %v136
  %712 = vmatmul.mubr.bf16.gmra.mxu0 %v135
  %v713 = vpop.f32.mrf.mxu0
  %v714 = vadd.f32 0.0, %v713
  %v715 = vpop.f32.mrf.mxu0
  %v716 = vpop.f32.mrf.mxu0
  %v717 = vadd.f32 0.0, %v716
  %v718 = vpop.f32.mrf.mxu0
  %719 = vdwg.mxu0
  %720 = vmatprep.subr.bf16.mxu0 0
  %721 = vmatpush1.bf16.msra.mxu0 %v550
  %722 = vmatprep.subr.bf16.mxu0 0
  %723 = vmatpush1.bf16.msra.mxu0 %v549
  %724 = vmatprep.subr.bf16.mxu0 0
  %725 = vmatpush1.bf16.msra.mxu0 %v548
  %726 = vmatprep.subr.bf16.mxu0 0
  %727 = vmatpush1.bf16.msra.mxu0 %v547
  %728 = vmatprep.subr.bf16.mxu0 0
  %729 = vmatpush1.bf16.msra.mxu0 %v546
  %730 = vmatprep.subr.bf16.mxu0 0
  %731 = vmatpush1.bf16.msra.mxu0 %v545
  %732 = vmatprep.subr.bf16.mxu0 0
  %733 = vmatpush1.bf16.msra.mxu0 %v544
  %734 = vmatprep.subr.bf16.mxu0 0
  %735 = vmatpush1.bf16.msra.mxu0 %v543
  %736 = vmatprep.subr.bf16.mxu0 0
  %737 = vmatpush2.bf16.msra.mxu0 %v558
  %738 = vmatprep.subr.bf16.mxu0 0
  %739 = vmatpush2.bf16.msra.mxu0 %v557
  %740 = vmatprep.subr.bf16.mxu0 0
  %741 = vmatpush2.bf16.msra.mxu0 %v556
  %742 = vmatprep.subr.bf16.mxu0 0
  %743 = vmatpush2.bf16.msra.mxu0 %v555
  %744 = vmatprep.subr.bf16.mxu0 0
  %745 = vmatpush2.bf16.msra.mxu0 %v554
  %746 = vmatprep.subr.bf16.mxu0 0
  %747 = vmatpush2.bf16.msra.mxu0 %v553
  %748 = vmatprep.subr.bf16.mxu0 0
  %749 = vmatpush2.bf16.msra.mxu0 %v552
  %750 = vmatprep.subr.bf16.mxu0 0
  %751 = vmatpush2.bf16.msra.mxu0 %v551
  %752 = vmatprep.mubr.bf16.mxu0 %v114
  %753 = vmatmul.mubr.bf16.gmra.mxu0 %v113
  %v754 = vpop.f32.mrf.mxu0
  %v755 = vadd.f32 %v690, %v754
  %v756 = vpop.f32.mrf.mxu0
  %v757 = vpop.f32.mrf.mxu0
  %v758 = vadd.f32 %v693, %v757
  %v759 = vpop.f32.mrf.mxu0
  %760 = vmatprep.mubr.bf16.mxu0 %v122
  %761 = vmatmul.mubr.bf16.gmra.mxu0 %v121
  %v762 = vpop.f32.mrf.mxu0
  %v763 = vadd.f32 %v698, %v762
  %v764 = vpop.f32.mrf.mxu0
  %v765 = vpop.f32.mrf.mxu0
  %v766 = vadd.f32 %v701, %v765
  %v767 = vpop.f32.mrf.mxu0
  %768 = vmatprep.mubr.bf16.mxu0 %v130
  %769 = vmatmul.mubr.bf16.gmra.mxu0 %v129
  %v770 = vpop.f32.mrf.mxu0
  %v771 = vadd.f32 %v706, %v770
  %v772 = vpop.f32.mrf.mxu0
  %v773 = vpop.f32.mrf.mxu0
  %v774 = vadd.f32 %v709, %v773
  %v775 = vpop.f32.mrf.mxu0
  %776 = vmatprep.mubr.bf16.mxu0 %v138
  %777 = vmatmul.mubr.bf16.gmra.mxu0 %v137
  %v778 = vpop.f32.mrf.mxu0
  %v779 = vadd.f32 %v714, %v778
  %v780 = vpop.f32.mrf.mxu0
  %v781 = vpop.f32.mrf.mxu0
  %v782 = vadd.f32 %v717, %v781
  %v783 = vpop.f32.mrf.mxu0
  %784 = vdwg.mxu0
  %785 = vmatprep.subr.bf16.mxu0 0
  %786 = vmatpush1.bf16.msra.mxu0 %v566
  %787 = vmatprep.subr.bf16.mxu0 0
  %788 = vmatpush1.bf16.msra.mxu0 %v565
  %789 = vmatprep.subr.bf16.mxu0 0
  %790 = vmatpush1.bf16.msra.mxu0 %v564
  %791 = vmatprep.subr.bf16.mxu0 0
  %792 = vmatpush1.bf16.msra.mxu0 %v563
  %793 = vmatprep.subr.bf16.mxu0 0
  %794 = vmatpush1.bf16.msra.mxu0 %v562
  %795 = vmatprep.subr.bf16.mxu0 0
  %796 = vmatpush1.bf16.msra.mxu0 %v561
  %797 = vmatprep.subr.bf16.mxu0 0
  %798 = vmatpush1.bf16.msra.mxu0 %v560
  %799 = vmatprep.subr.bf16.mxu0 0
  %800 = vmatpush1.bf16.msra.mxu0 %v559
  %801 = vmatprep.subr.bf16.mxu0 0
  %802 = vmatpush2.bf16.msra.mxu0 %v574
  %803 = vmatprep.subr.bf16.mxu0 0
  %804 = vmatpush2.bf16.msra.mxu0 %v573
  %805 = vmatprep.subr.bf16.mxu0 0
  %806 = vmatpush2.bf16.msra.mxu0 %v572
  %807 = vmatprep.subr.bf16.mxu0 0
  %808 = vmatpush2.bf16.msra.mxu0 %v571
  %809 = vmatprep.subr.bf16.mxu0 0
  %810 = vmatpush2.bf16.msra.mxu0 %v570
  %811 = vmatprep.subr.bf16.mxu0 0
  %812 = vmatpush2.bf16.msra.mxu0 %v569
  %813 = vmatprep.subr.bf16.mxu0 0
  %814 = vmatpush2.bf16.msra.mxu0 %v568
  %815 = vmatprep.subr.bf16.mxu0 0
  %816 = vmatpush2.bf16.msra.mxu0 %v567
  %817 = vmatprep.mubr.bf16.mxu0 %v116
  %818 = vmatmul.mubr.bf16.gmra.mxu0 %v115
  %v819 = vpop.f32.mrf.mxu0
  %v820 = vadd.f32 %v755, %v819
  %v821 = vpop.f32.mrf.mxu0
  %v822 = vpop.f32.mrf.mxu0
  %v823 = vadd.f32 %v758, %v822
  %v824 = vpop.f32.mrf.mxu0
  %825 = vmatprep.mubr.bf16.mxu0 %v124
  %826 = vmatmul.mubr.bf16.gmra.mxu0 %v123
  %v827 = vpop.f32.mrf.mxu0
  %v828 = vadd.f32 %v763, %v827
  %v829 = vpop.f32.mrf.mxu0
  %v830 = vpop.f32.mrf.mxu0
  %v831 = vadd.f32 %v766, %v830
  %v832 = vpop.f32.mrf.mxu0
  %833 = vmatprep.mubr.bf16.mxu0 %v132
  %834 = vmatmul.mubr.bf16.gmra.mxu0 %v131
  %v835 = vpop.f32.mrf.mxu0
  %v836 = vadd.f32 %v771, %v835
  %v837 = vpop.f32.mrf.mxu0
  %v838 = vpop.f32.mrf.mxu0
  %v839 = vadd.f32 %v774, %v838
  %v840 = vpop.f32.mrf.mxu0
  %841 = vmatprep.mubr.bf16.mxu0 %v140
  %842 = vmatmul.mubr.bf16.gmra.mxu0 %v139
  %v843 = vpop.f32.mrf.mxu0
  %v844 = vadd.f32 %v779, %v843
  %v845 = vpop.f32.mrf.mxu0
  %v846 = vpop.f32.mrf.mxu0
  %v847 = vadd.f32 %v782, %v846
  %v848 = vpop.f32.mrf.mxu0
  %849 = vdwg.mxu0
  %850 = vmatprep.subr.bf16.mxu0 0
  %851 = vmatpush1.bf16.msra.mxu0 %v582
  %852 = vmatprep.subr.bf16.mxu0 0
  %853 = vmatpush1.bf16.msra.mxu0 %v581
  %854 = vmatprep.subr.bf16.mxu0 0
  %855 = vmatpush1.bf16.msra.mxu0 %v580
  %856 = vmatprep.subr.bf16.mxu0 0
  %857 = vmatpush1.bf16.msra.mxu0 %v579
  %858 = vmatprep.subr.bf16.mxu0 0
  %859 = vmatpush1.bf16.msra.mxu0 %v578
  %860 = vmatprep.subr.bf16.mxu0 0
  %861 = vmatpush1.bf16.msra.mxu0 %v577
  %862 = vmatprep.subr.bf16.mxu0 0
  %863 = vmatpush1.bf16.msra.mxu0 %v576
  %864 = vmatprep.subr.bf16.mxu0 0
  %865 = vmatpush1.bf16.msra.mxu0 %v575
  %866 = vmatprep.subr.bf16.mxu0 0
  %867 = vmatpush2.bf16.msra.mxu0 %v590
  %868 = vmatprep.subr.bf16.mxu0 0
  %869 = vmatpush2.bf16.msra.mxu0 %v589
  %870 = vmatprep.subr.bf16.mxu0 0
  %871 = vmatpush2.bf16.msra.mxu0 %v588
  %872 = vmatprep.subr.bf16.mxu0 0
  %873 = vmatpush2.bf16.msra.mxu0 %v587
  %874 = vmatprep.subr.bf16.mxu0 0
  %875 = vmatpush2.bf16.msra.mxu0 %v586
  %876 = vmatprep.subr.bf16.mxu0 0
  %877 = vmatpush2.bf16.msra.mxu0 %v585
  %878 = vmatprep.subr.bf16.mxu0 0
  %879 = vmatpush2.bf16.msra.mxu0 %v584
  %880 = vmatprep.subr.bf16.mxu0 0
  %881 = vmatpush2.bf16.msra.mxu0 %v583
  %882 = vmatprep.mubr.bf16.mxu0 %v118
  %883 = vmatmul.mubr.bf16.gmra.mxu0 %v117
  %v884 = vpop.f32.mrf.mxu0
  %v885 = vadd.f32 %v820, %v884
  %v886 = vpop.f32.mrf.mxu0
  %v887 = vpop.f32.mrf.mxu0
  %v888 = vadd.f32 %v823, %v887
  %v889 = vpop.f32.mrf.mxu0
  %890 = vmatprep.mubr.bf16.mxu0 %v126
  %891 = vmatmul.mubr.bf16.gmra.mxu0 %v125
  %v892 = vpop.f32.mrf.mxu0
  %v893 = vadd.f32 %v828, %v892
  %v894 = vpop.f32.mrf.mxu0
  %v895 = vpop.f32.mrf.mxu0
  %v896 = vadd.f32 %v831, %v895
  %v897 = vpop.f32.mrf.mxu0
  %898 = vmatprep.mubr.bf16.mxu0 %v134
  %899 = vmatmul.mubr.bf16.gmra.mxu0 %v133
  %v900 = vpop.f32.mrf.mxu0
  %v901 = vadd.f32 %v836, %v900
  %v902 = vpop.f32.mrf.mxu0
  %v903 = vpop.f32.mrf.mxu0
  %v904 = vadd.f32 %v839, %v903
  %v905 = vpop.f32.mrf.mxu0
  %906 = vmatprep.mubr.bf16.mxu0 %v142
  %907 = vmatmul.mubr.bf16.gmra.mxu0 %v141
  %v908 = vpop.f32.mrf.mxu0
  %v909 = vadd.f32 %v844, %v908
  %v910 = vpop.f32.mrf.mxu0
  %v911 = vpop.f32.mrf.mxu0
  %v912 = vadd.f32 %v847, %v911
  %v913 = vpop.f32.mrf.mxu0
  %914 = vdwg.mxu0
  %v915 = vadd.f32 %v39, %v885
  %v916 = vadd.f32 %v40, %v888
  %v917 = vadd.f32 %v41, %v893
  %v918 = vadd.f32 %v42, %v896
  %v919 = vadd.f32 %v43, %v901
  %v920 = vadd.f32 %v44, %v904
  %v921 = vadd.f32 %v45, %v909
  %v922 = vadd.f32 %v46, %v912
  %923 = vst [vmem:[#allocation2] sm:$0xff] %v915
  %924 = vst [vmem:[#allocation2 + $0x8] sm:$0xff] %v916
  %925 = vst [vmem:[#allocation2 + $0x10] sm:$0xff] %v917
  %926 = vst [vmem:[#allocation2 + $0x18] sm:$0xff] %v918
  %927 = vst [vmem:[#allocation2 + $0x20] sm:$0xff] %v919
  %928 = vst [vmem:[#allocation2 + $0x28] sm:$0xff] %v920
  %929 = vst [vmem:[#allocation2 + $0x30] sm:$0xff] %v921
  %930 = vst [vmem:[#allocation2 + $0x38] sm:$0xff] %v922
  // Predicated region
  $region34: #{pytorch_mlp_forward.1} parent=0 // pred_check
    %p931 = pneg %p27
  $region35: #{pytorch_mlp_forward.1} parent=0 // pred_check_branch
    %933 = sbr.rel (%p931) target = $region37
  $region36: #{pytorch_mlp_forward.1} parent=0 // pred_region
    %v934 = vld [vmem:[#allocation2] sm:$0xff]
    %v935 = vld [vmem:[#allocation2 + $0x8] sm:$0xff]
    %v936 = vld [vmem:[#allocation2 + $0x10] sm:$0xff]
    %v937 = vld [vmem:[#allocation2 + $0x18] sm:$0xff]
    %v938 = vld [vmem:[#allocation2 + $0x20] sm:$0xff]
    %v939 = vld [vmem:[#allocation2 + $0x28] sm:$0xff]
    %v940 = vld [vmem:[#allocation2 + $0x30] sm:$0xff]
    %v941 = vld [vmem:[#allocation2 + $0x38] sm:$0xff]
    %v942 = vld [vmem:[%s2] sm:$0x3]
    %v943 = vadd.f32 %v934, %v935
    %v944 = vadd.f32 %v943, %v936
    %v945 = vadd.f32 %v944, %v937
    %v946 = vadd.f32 %v945, %v938
    %v947 = vadd.f32 %v946, %v939
    %v948 = vadd.f32 %v947, %v940
    %v949 = vadd.f32 %v948, %v941
    %v950 = vrot.slane %v949, 4
    %v951 = vadd.f32 %v949, %v950
    %v952 = vrot.slane %v951, 2
    %v953 = vadd.f32 %v951, %v952
    %v954 = vrot.slane %v953, 1
    %v955 = vadd.f32 %v953, %v954
    %v956 = vrcp.pop 64.0
    %v957 = vmul.f32 %v955, %v956
    %v958 = vsub.f32 %v934, %v957
    %v959 = vsub.f32 %v935, %v957
    %v960 = vsub.f32 %v936, %v957
    %v961 = vsub.f32 %v937, %v957
    %v962 = vsub.f32 %v938, %v957
    %v963 = vsub.f32 %v939, %v957
    %v964 = vsub.f32 %v940, %v957
    %v965 = vsub.f32 %v941, %v957
    %v966 = vmul.f32 %v958, %v958
    %v967 = vmul.f32 %v959, %v959
    %v968 = vmul.f32 %v960, %v960
    %v969 = vmul.f32 %v961, %v961
    %v970 = vmul.f32 %v962, %v962
    %v971 = vmul.f32 %v963, %v963
    %v972 = vmul.f32 %v964, %v964
    %v973 = vmul.f32 %v965, %v965
    %v974 = vadd.f32 %v966, %v967
    %v975 = vadd.f32 %v974, %v968
    %v976 = vadd.f32 %v975, %v969
    %v977 = vadd.f32 %v976, %v970
    %v978 = vadd.f32 %v977, %v971
    %v979 = vadd.f32 %v978, %v972
    %v980 = vadd.f32 %v979, %v973
    %v981 = vrot.slane %v980, 4
    %v982 = vadd.f32 %v980, %v981
    %v983 = vrot.slane %v982, 2
    %v984 = vadd.f32 %v982, %v983
    %v985 = vrot.slane %v984, 1
    %v986 = vadd.f32 %v984, %v985
    %v987 = vmul.f32 %v986, %v956
    %v988 = vadd.f32 %v987, 1e-05
    %v989 = vrsqrt.pop %v988
    %v990 = vmul.f32 %v958, %v989
    %v991 = vmul.f32 %v959, %v989
    %v992 = vmul.f32 %v960, %v989
    %v993 = vmul.f32 %v961, %v989
    %v994 = vmul.f32 %v962, %v989
    %v995 = vmul.f32 %v963, %v989
    %v996 = vmul.f32 %v964, %v989
    %v997 = vmul.f32 %v965, %v989
    %v998 = vlaneseq
    %v999 = vshrl.u32 %v998, 7
    %v1000 = vsub.s32 0, %v999
    %v1001 = vrot.slane %v942, %v1000
    %v1002 = vmul.f32 %v990, %v1001
    %v1003 = vmul.f32 %v991, %v1001
    %v1004 = vmul.f32 %v992, %v1001
    %v1005 = vmul.f32 %v993, %v1001
    %v1006 = vmul.f32 %v994, %v1001
    %v1007 = vmul.f32 %v995, %v1001
    %v1008 = vmul.f32 %v996, %v1001
    %v1009 = vmul.f32 %v997, %v1001
    %v1010 = vlaneseq
    %v1011 = vshrl.u32 %v1010, 7
    %v1012 = vsub.s32 1, %v1011
    %v1013 = vrot.slane %v942, %v1012
    %v1014 = vadd.f32 %v1002, %v1013
    %v1015 = vadd.f32 %v1003, %v1013
    %v1016 = vadd.f32 %v1004, %v1013
    %v1017 = vadd.f32 %v1005, %v1013
    %v1018 = vadd.f32 %v1006, %v1013
    %v1019 = vadd.f32 %v1007, %v1013
    %v1020 = vadd.f32 %v1008, %v1013
    %v1021 = vadd.f32 %v1009, %v1013
    %v1022 = vmax.f32 %v1014, 0.0
    %v1023 = vmax.f32 %v1015, 0.0
    %v1024 = vmax.f32 %v1016, 0.0
    %v1025 = vmax.f32 %v1017, 0.0
    %v1026 = vmax.f32 %v1018, 0.0
    %v1027 = vmax.f32 %v1019, 0.0
    %v1028 = vmax.f32 %v1020, 0.0
    %v1029 = vmax.f32 %v1021, 0.0
    %v1030 = vpack.c.bf16 %v1023, %v1022
    %v1031 = vpack.c.bf16 %v1025, %v1024
    %v1032 = vpack.c.bf16 %v1027, %v1026
    %v1033 = vpack.c.bf16 %v1029, %v1028
    %v1034 = vld [vmem:[%s3] sm:$0xf]
    %v1035 = vld [vmem:[%s3 + $0x4] sm:$0xf]
    %v1036 = vld [vmem:[%s3 + $0x8] sm:$0xf]
    %v1037 = vld [vmem:[%s3 + $0xc] sm:$0xf]
    %v1038 = vld [vmem:[%s3 + $0x10] sm:$0xf]
    %v1039 = vld [vmem:[%s3 + $0x14] sm:$0xf]
    %v1040 = vld [vmem:[%s3 + $0x18] sm:$0xf]
    %v1041 = vld [vmem:[%s3 + $0x1c] sm:$0xf]
    %v1042 = vld [vmem:[%s3 + $0x20] sm:$0xf]
    %v1043 = vld [vmem:[%s3 + $0x24] sm:$0xf]
    %v1044 = vld [vmem:[%s3 + $0x28] sm:$0xf]
    %v1045 = vld [vmem:[%s3 + $0x2c] sm:$0xf]
    %v1046 = vld [vmem:[%s3 + $0x30] sm:$0xf]
    %v1047 = vld [vmem:[%s3 + $0x34] sm:$0xf]
    %v1048 = vld [vmem:[%s3 + $0x38] sm:$0xf]
    %v1049 = vld [vmem:[%s3 + $0x3c] sm:$0xf]
    %v1066 = vunpack.c.l.b16 %v1034
    %v1067 = vunpack.c.l.b16 %v1035
    %v1068 = vunpack.c.l.b16 %v1036
    %v1069 = vunpack.c.l.b16 %v1037
    %v1070 = vunpack.c.l.b16 %v1038
    %v1071 = vunpack.c.l.b16 %v1039
    %v1072 = vunpack.c.l.b16 %v1040
    %v1073 = vunpack.c.l.b16 %v1041
    %v1074 = vunpack.c.l.b16 %v1042
    %v1075 = vunpack.c.l.b16 %v1043
    %v1076 = vunpack.c.l.b16 %v1044
    %v1077 = vunpack.c.l.b16 %v1045
    %v1078 = vunpack.c.l.b16 %v1046
    %v1079 = vunpack.c.l.b16 %v1047
    %v1080 = vunpack.c.l.b16 %v1048
    %v1081 = vunpack.c.l.b16 %v1049
    %v1082 = vpack.c.b16 %v1067, %v1066
    %v1083 = vpack.c.b16 %v1069, %v1068
    %v1084 = vpack.c.b16 %v1071, %v1070
    %v1085 = vpack.c.b16 %v1073, %v1072
    %v1086 = vpack.c.b16 %v1075, %v1074
    %v1087 = vpack.c.b16 %v1077, %v1076
    %v1088 = vpack.c.b16 %v1079, %v1078
    %v1089 = vpack.c.b16 %v1081, %v1080
    %1098 = vmatprep.subr.bf16.mxu0 0
    %1099 = vmatpush1.bf16.msra.mxu0 %v1089
    %1100 = vmatprep.subr.bf16.mxu0 0
    %1101 = vmatpush1.bf16.msra.mxu0 %v1088
    %1102 = vmatprep.subr.bf16.mxu0 0
    %1103 = vmatpush1.bf16.msra.mxu0 %v1087
    %1104 = vmatprep.subr.bf16.mxu0 0
    %1105 = vmatpush1.bf16.msra.mxu0 %v1086
    %1106 = vmatprep.subr.bf16.mxu0 0
    %1107 = vmatpush1.bf16.msra.mxu0 %v1085
    %1108 = vmatprep.subr.bf16.mxu0 0
    %1109 = vmatpush1.bf16.msra.mxu0 %v1084
    %1110 = vmatprep.subr.bf16.mxu0 0
    %1111 = vmatpush1.bf16.msra.mxu0 %v1083
    %1112 = vmatprep.subr.bf16.mxu0 0
    %1113 = vmatpush1.bf16.msra.mxu0 %v1082
    %1114 = vmatprep.subr.bf16.mxu0 0
    %1115 = vmatpush2.bf16.msra.mxu0 0
    %1116 = vmatprep.subr.bf16.mxu0 0
    %1117 = vmatpush2.bf16.msra.mxu0 0
    %1118 = vmatprep.subr.bf16.mxu0 0
    %1119 = vmatpush2.bf16.msra.mxu0 0
    %1120 = vmatprep.subr.bf16.mxu0 0
    %1121 = vmatpush2.bf16.msra.mxu0 0
    %1122 = vmatprep.subr.bf16.mxu0 0
    %1123 = vmatpush2.bf16.msra.mxu0 0
    %1124 = vmatprep.subr.bf16.mxu0 0
    %1125 = vmatpush2.bf16.msra.mxu0 0
    %1126 = vmatprep.subr.bf16.mxu0 0
    %1127 = vmatpush2.bf16.msra.mxu0 0
    %1128 = vmatprep.subr.bf16.mxu0 0
    %1129 = vmatpush2.bf16.msra.mxu0 0
    %1130 = vmatprep.mubr.bf16.mxu0 0
    %1131 = vmatmul.mubr.bf16.gmra.mxu0 %v1030
    %v1132 = vpop.f32.mrf.mxu0
    %v1133 = vadd.f32 0.0, %v1132
    %v1134 = vpop.f32.mrf.mxu0
    %v1135 = vpop.f32.mrf.mxu0
    %v1136 = vadd.f32 0.0, %v1135
    %v1137 = vpop.f32.mrf.mxu0
    %1138 = vmatprep.mubr.bf16.mxu0 0
    %1139 = vmatmul.mubr.bf16.gmra.mxu0 %v1031
    %v1140 = vpop.f32.mrf.mxu0
    %v1141 = vadd.f32 0.0, %v1140
    %v1142 = vpop.f32.mrf.mxu0
    %v1143 = vpop.f32.mrf.mxu0
    %v1144 = vadd.f32 0.0, %v1143
    %v1145 = vpop.f32.mrf.mxu0
    %1146 = vmatprep.mubr.bf16.mxu0 0
    %1147 = vmatmul.mubr.bf16.gmra.mxu0 %v1032
    %v1148 = vpop.f32.mrf.mxu0
    %v1149 = vadd.f32 0.0, %v1148
    %v1150 = vpop.f32.mrf.mxu0
    %v1151 = vpop.f32.mrf.mxu0
    %v1152 = vadd.f32 0.0, %v1151
    %v1153 = vpop.f32.mrf.mxu0
    %1154 = vmatprep.mubr.bf16.mxu0 0
    %1155 = vmatmul.mubr.bf16.gmra.mxu0 %v1033
    %v1156 = vpop.f32.mrf.mxu0
    %v1157 = vadd.f32 0.0, %v1156
    %v1158 = vpop.f32.mrf.mxu0
    %v1159 = vpop.f32.mrf.mxu0
    %v1160 = vadd.f32 0.0, %v1159
    %v1161 = vpop.f32.mrf.mxu0
    %1162 = vdwg.mxu0
    %v1163 = vld [vmem:[%s4] sm:$0x3]
    %v1164 = vadd.f32 %v1133, %v1136
    %v1165 = vadd.f32 %v1164, %v1141
    %v1166 = vadd.f32 %v1165, %v1144
    %v1167 = vadd.f32 %v1166, %v1149
    %v1168 = vadd.f32 %v1167, %v1152
    %v1169 = vadd.f32 %v1168, %v1157
    %v1170 = vadd.f32 %v1169, %v1160
    %v1171 = vrot.slane %v1170, 4
    %v1172 = vadd.f32 %v1170, %v1171
    %v1173 = vrot.slane %v1172, 2
    %v1174 = vadd.f32 %v1172, %v1173
    %v1175 = vrot.slane %v1174, 1
    %v1176 = vadd.f32 %v1174, %v1175
    %v1177 = vmul.f32 %v1176, %v956
    %v1178 = vsub.f32 %v1133, %v1177
    %v1179 = vsub.f32 %v1136, %v1177
    %v1180 = vsub.f32 %v1141, %v1177
    %v1181 = vsub.f32 %v1144, %v1177
    %v1182 = vsub.f32 %v1149, %v1177
    %v1183 = vsub.f32 %v1152, %v1177
    %v1184 = vsub.f32 %v1157, %v1177
    %v1185 = vsub.f32 %v1160, %v1177
    %v1186 = vmul.f32 %v1178, %v1178
    %v1187 = vmul.f32 %v1179, %v1179
    %v1188 = vmul.f32 %v1180, %v1180
    %v1189 = vmul.f32 %v1181, %v1181
    %v1190 = vmul.f32 %v1182, %v1182
    %v1191 = vmul.f32 %v1183, %v1183
    %v1192 = vmul.f32 %v1184, %v1184
    %v1193 = vmul.f32 %v1185, %v1185
    %v1194 = vadd.f32 %v1186, %v1187
    %v1195 = vadd.f32 %v1194, %v1188
    %v1196 = vadd.f32 %v1195, %v1189
    %v1197 = vadd.f32 %v1196, %v1190
    %v1198 = vadd.f32 %v1197, %v1191
    %v1199 = vadd.f32 %v1198, %v1192
    %v1200 = vadd.f32 %v1199, %v1193
    %v1201 = vrot.slane %v1200, 4
    %v1202 = vadd.f32 %v1200, %v1201
    %v1203 = vrot.slane %v1202, 2
    %v1204 = vadd.f32 %v1202, %v1203
    %v1205 = vrot.slane %v1204, 1
    %v1206 = vadd.f32 %v1204, %v1205
    %v1207 = vmul.f32 %v1206, %v956
    %v1208 = vadd.f32 %v1207, 1e-05
    %v1209 = vrsqrt.pop %v1208
    %v1210 = vmul.f32 %v1178, %v1209
    %v1211 = vmul.f32 %v1179, %v1209
    %v1212 = vmul.f32 %v1180, %v1209
    %v1213 = vmul.f32 %v1181, %v1209
    %v1214 = vmul.f32 %v1182, %v1209
    %v1215 = vmul.f32 %v1183, %v1209
    %v1216 = vmul.f32 %v1184, %v1209
    %v1217 = vmul.f32 %v1185, %v1209
    %v1218 = vlaneseq
    %v1219 = vshrl.u32 %v1218, 7
    %v1220 = vsub.s32 0, %v1219
    %v1221 = vrot.slane %v1163, %v1220
    %v1222 = vmul.f32 %v1210, %v1221
    %v1223 = vmul.f32 %v1211, %v1221
    %v1224 = vmul.f32 %v1212, %v1221
    %v1225 = vmul.f32 %v1213, %v1221
    %v1226 = vmul.f32 %v1214, %v1221
    %v1227 = vmul.f32 %v1215, %v1221
    %v1228 = vmul.f32 %v1216, %v1221
    %v1229 = vmul.f32 %v1217, %v1221
    %v1230 = vlaneseq
    %v1231 = vshrl.u32 %v1230, 7
    %v1232 = vsub.s32 1, %v1231
    %v1233 = vrot.slane %v1163, %v1232
    %v1234 = vadd.f32 %v1222, %v1233
    %v1235 = vadd.f32 %v1223, %v1233
    %v1236 = vadd.f32 %v1224, %v1233
    %v1237 = vadd.f32 %v1225, %v1233
    %v1238 = vadd.f32 %v1226, %v1233
    %v1239 = vadd.f32 %v1227, %v1233
    %v1240 = vadd.f32 %v1228, %v1233
    %v1241 = vadd.f32 %v1229, %v1233
    %v1242 = vmax.f32 %v1234, 0.0
    %v1243 = vmax.f32 %v1235, 0.0
    %v1244 = vmax.f32 %v1236, 0.0
    %v1245 = vmax.f32 %v1237, 0.0
    %v1246 = vmax.f32 %v1238, 0.0
    %v1247 = vmax.f32 %v1239, 0.0
    %v1248 = vmax.f32 %v1240, 0.0
    %v1249 = vmax.f32 %v1241, 0.0
    %v1250 = vpack.c.bf16 %v1243, %v1242
    %v1251 = vpack.c.bf16 %v1245, %v1244
    %v1252 = vpack.c.bf16 %v1247, %v1246
    %v1253 = vpack.c.bf16 %v1249, %v1248
    %v1254 = vld [vmem:[%s5] sm:$0xf]
    %v1255 = vld [vmem:[%s5 + $0x4] sm:$0xf]
    %v1256 = vld [vmem:[%s5 + $0x8] sm:$0xf]
    %v1257 = vld [vmem:[%s5 + $0xc] sm:$0xf]
    %v1258 = vld [vmem:[%s5 + $0x10] sm:$0xf]
    %v1259 = vld [vmem:[%s5 + $0x14] sm:$0xf]
    %v1260 = vld [vmem:[%s5 + $0x18] sm:$0xf]
    %v1261 = vld [vmem:[%s5 + $0x1c] sm:$0xf]
    %v1262 = vld [vmem:[%s5 + $0x20] sm:$0xf]
    %v1263 = vld [vmem:[%s5 + $0x24] sm:$0xf]
    %v1264 = vld [vmem:[%s5 + $0x28] sm:$0xf]
    %v1265 = vld [vmem:[%s5 + $0x2c] sm:$0xf]
    %v1266 = vld [vmem:[%s5 + $0x30] sm:$0xf]
    %v1267 = vld [vmem:[%s5 + $0x34] sm:$0xf]
    %v1268 = vld [vmem:[%s5 + $0x38] sm:$0xf]
    %v1269 = vld [vmem:[%s5 + $0x3c] sm:$0xf]
    %v1270 = vld [vmem:[%s6] sm:$0x1]
    %v1272 = vlaneseq
    %v1273 = vshrl.u32 %v1272, 7
    %v1274 = vsub.s32 0, %v1273
    %v1275 = vrot.slane %v1270, %v1274
    %v1293 = vunpack.c.l.b16 %v1254
    %v1294 = vunpack.c.l.b16 %v1255
    %v1295 = vunpack.c.l.b16 %v1256
    %v1296 = vunpack.c.l.b16 %v1257
    %v1297 = vunpack.c.l.b16 %v1258
    %v1298 = vunpack.c.l.b16 %v1259
    %v1299 = vunpack.c.l.b16 %v1260
    %v1300 = vunpack.c.l.b16 %v1261
    %v1301 = vunpack.c.l.b16 %v1262
    %v1302 = vunpack.c.l.b16 %v1263
    %v1303 = vunpack.c.l.b16 %v1264
    %v1304 = vunpack.c.l.b16 %v1265
    %v1305 = vunpack.c.l.b16 %v1266
    %v1306 = vunpack.c.l.b16 %v1267
    %v1307 = vunpack.c.l.b16 %v1268
    %v1308 = vunpack.c.l.b16 %v1269
    %v1309 = vpack.c.b16 %v1294, %v1293
    %v1310 = vpack.c.b16 %v1296, %v1295
    %v1311 = vpack.c.b16 %v1298, %v1297
    %v1312 = vpack.c.b16 %v1300, %v1299
    %v1313 = vpack.c.b16 %v1302, %v1301
    %v1314 = vpack.c.b16 %v1304, %v1303
    %v1315 = vpack.c.b16 %v1306, %v1305
    %v1316 = vpack.c.b16 %v1308, %v1307
    %1325 = vmatprep.subr.bf16.mxu0 0
    %1326 = vmatpush1.bf16.msra.mxu0 %v1316
    %1327 = vmatprep.subr.bf16.mxu0 0
    %1328 = vmatpush1.bf16.msra.mxu0 %v1315
    %1329 = vmatprep.subr.bf16.mxu0 0
    %1330 = vmatpush1.bf16.msra.mxu0 %v1314
    %1331 = vmatprep.subr.bf16.mxu0 0
    %1332 = vmatpush1.bf16.msra.mxu0 %v1313
    %1333 = vmatprep.subr.bf16.mxu0 0
    %1334 = vmatpush1.bf16.msra.mxu0 %v1312
    %1335 = vmatprep.subr.bf16.mxu0 0
    %1336 = vmatpush1.bf16.msra.mxu0 %v1311
    %1337 = vmatprep.subr.bf16.mxu0 0
    %1338 = vmatpush1.bf16.msra.mxu0 %v1310
    %1339 = vmatprep.subr.bf16.mxu0 0
    %1340 = vmatpush1.bf16.msra.mxu0 %v1309
    %1341 = vmatprep.subr.bf16.mxu0 0
    %1342 = vmatpush2.bf16.msra.mxu0 0
    %1343 = vmatprep.subr.bf16.mxu0 0
    %1344 = vmatpush2.bf16.msra.mxu0 0
    %1345 = vmatprep.subr.bf16.mxu0 0
    %1346 = vmatpush2.bf16.msra.mxu0 0
    %1347 = vmatprep.subr.bf16.mxu0 0
    %1348 = vmatpush2.bf16.msra.mxu0 0
    %1349 = vmatprep.subr.bf16.mxu0 0
    %1350 = vmatpush2.bf16.msra.mxu0 0
    %1351 = vmatprep.subr.bf16.mxu0 0
    %1352 = vmatpush2.bf16.msra.mxu0 0
    %1353 = vmatprep.subr.bf16.mxu0 0
    %1354 = vmatpush2.bf16.msra.mxu0 0
    %1355 = vmatprep.subr.bf16.mxu0 0
    %1356 = vmatpush2.bf16.msra.mxu0 0
    %1357 = vmatprep.mubr.bf16.mxu0 0
    %1358 = vmatmul.mubr.bf16.gmra.mxu0 %v1250
    %v1359 = vpop.f32.mrf.mxu0
    %v1360 = vadd.f32 %v1275, %v1359
    %v1361 = vpop.f32.mrf.mxu0
    %v1362 = vpop.f32.mrf.mxu0
    %v1363 = vadd.f32 %v1275, %v1362
    %v1364 = vpop.f32.mrf.mxu0
    %1365 = vmatprep.mubr.bf16.mxu0 0
    %1366 = vmatmul.mubr.bf16.gmra.mxu0 %v1251
    %v1367 = vpop.f32.mrf.mxu0
    %v1368 = vadd.f32 %v1275, %v1367
    %v1369 = vpop.f32.mrf.mxu0
    %v1370 = vpop.f32.mrf.mxu0
    %v1371 = vadd.f32 %v1275, %v1370
    %v1372 = vpop.f32.mrf.mxu0
    %1373 = vmatprep.mubr.bf16.mxu0 0
    %1374 = vmatmul.mubr.bf16.gmra.mxu0 %v1252
    %v1375 = vpop.f32.mrf.mxu0
    %v1376 = vadd.f32 %v1275, %v1375
    %v1377 = vpop.f32.mrf.mxu0
    %v1378 = vpop.f32.mrf.mxu0
    %v1379 = vadd.f32 %v1275, %v1378
    %v1380 = vpop.f32.mrf.mxu0
    %1381 = vmatprep.mubr.bf16.mxu0 0
    %1382 = vmatmul.mubr.bf16.gmra.mxu0 %v1253
    %v1383 = vpop.f32.mrf.mxu0
    %v1384 = vadd.f32 %v1275, %v1383
    %v1385 = vpop.f32.mrf.mxu0
    %v1386 = vpop.f32.mrf.mxu0
    %v1387 = vadd.f32 %v1275, %v1386
    %v1388 = vpop.f32.mrf.mxu0
    %1389 = vdwg.mxu0
    %1390 = vst [vmem:[%s7] sm:$0xff] %v1360
    %1391 = vst [vmem:[%s7 + $0x8] sm:$0xff] %v1363
    %1392 = vst [vmem:[%s7 + $0x10] sm:$0xff] %v1368
    %1393 = vst [vmem:[%s7 + $0x18] sm:$0xff] %v1371
    %1394 = vst [vmem:[%s7 + $0x20] sm:$0xff] %v1376
    %1395 = vst [vmem:[%s7 + $0x28] sm:$0xff] %v1379
    %1396 = vst [vmem:[%s7 + $0x30] sm:$0xff] %v1384
    %1397 = vst [vmem:[%s7 + $0x38] sm:$0xff] %v1387
  $region37: #{pytorch_mlp_forward.1} parent=0 // pred_fallthru
    _
  // Predicated region
  $region38: #{pytorch_mlp_forward.1} parent=0 // pred_check
    _
  $region39: #{pytorch_mlp_forward.1} parent=0 // pred_check_branch
    %1399 = sbr.rel (0) target = $region41
  $region40: #{pytorch_mlp_forward.1} parent=0 // pred_region
    _
  $region41: #{pytorch_mlp_forward.1} parent=0 // pred_fallthru
    _
  // Predicated region
  $region42: #{pytorch_mlp_forward.1} parent=0 // pred_check
    _
  $region43: #{pytorch_mlp_forward.1} parent=0 // pred_check_branch
    %1401 = sbr.rel (0) target = $region45
  $region44: #{pytorch_mlp_forward.1} parent=0 // pred_region
    _
  $region45: #{pytorch_mlp_forward.1} parent=0 // pred_fallthru
    _

</llo_original>
